<compile_context>
chip_gen: v5e
topology: v5e:2x2
jax: 0.10.0
libtpu: 0.0.40
codegen_flags: <defaults>
</compile_context>

<pallas_src>
import jax
import jax.numpy as jnp
from jax.experimental import pallas as pl
from jax.experimental.pallas import tpu as pltpu

H1 = 400          # logical hidden sizes (PyTorch module)
H2 = 300
H1_PAD = 512      # 400 -> 512 (sublane/lane-dense)
H2_PAD = 384      # 300 -> 384
W3_ROWS = 8       # final (1, H2) weight padded to 8 sublane rows; row 0 is real


def critic_kernel(xu_ref, w1_ref, b1_ref, w2_ref, b2_ref, w3_ref, b3_ref, o_ref):
    """Transposed-layout MLP. Shapes (TB = batch tile):
       xu_ref : (S+A, TB)  bf16      o_ref : (1, TB)  f32
       w1_ref : (512, S+A) bf16      b1_ref: (512, 1) f32
       w2_ref : (384, 512) bf16      b2_ref: (384, 1) f32
       w3_ref : (8, 384)   f32       b3_ref: (1, 1)   f32
    """
    # Layer 1: h1 = relu(W1ᵀ @ xuᵀ + b1)       -- concat already fused in wrapper
    h1 = jnp.dot(w1_ref[...], xu_ref[...],
                 preferred_element_type=jnp.float32) + b1_ref[...]
    h1 = jnp.maximum(h1, 0.0)                                    # (512, TB) f32

    # Layer 2: h2 = relu(W2ᵀ @ h1 + b2)
    h2 = jnp.dot(w2_ref[...], h1.astype(jnp.bfloat16),
                 preferred_element_type=jnp.float32) + b2_ref[...]
    h2 = jnp.maximum(h2, 0.0)                                    # (384, TB) f32

    # Layer 3 (kept f32): rows 1..7 of w3 are zero padding, only row 0 is real.
    q = jnp.dot(w3_ref[...], h2, preferred_element_type=jnp.float32)   # (8, TB)
    o_ref[...] = q[0:1, :] + b3_ref[...]                         # (1, TB) lane-dense


def init_linear(key, fan_in, fan_out):
    # Matches PyTorch nn.Linear default init: U(-1/sqrt(fan_in), 1/sqrt(fan_in)).
    kw, kb = jax.random.split(key)
    bound = 1.0 / float(fan_in) ** 0.5
    w = jax.random.uniform(kw, (fan_in, fan_out), jnp.float32, -bound, bound)
    b = jax.random.uniform(kb, (1, fan_out), jnp.float32, -bound, bound)
    return w, b


def make_critic_params(state_dim, action_dim, key):
    k1, k2, k3 = jax.random.split(key, 3)
    return (init_linear(k1, state_dim + action_dim, H1),
            init_linear(k2, H1, H2),
            init_linear(k3, H2, 1))


def prepare_params(params):
    """One-time kernel-layout prep: transpose, zero-pad to dense shapes,
    bf16 for the two big weights, f32 for biases and the final layer."""
    (w1, b1), (w2, b2), (w3, b3) = params
    w1t = jnp.pad(w1.T, ((0, H1_PAD - H1), (0, 0))).astype(jnp.bfloat16)       # (512, S+A)
    b1t = jnp.pad(b1.reshape(-1, 1), ((0, H1_PAD - H1), (0, 0)))               # (512, 1) f32
    w2t = jnp.pad(w2.T, ((0, H2_PAD - H2), (0, H1_PAD - H1))).astype(jnp.bfloat16)  # (384, 512)
    b2t = jnp.pad(b2.reshape(-1, 1), ((0, H2_PAD - H2), (0, 0)))               # (384, 1) f32
    w3t = jnp.pad(w3.T, ((0, W3_ROWS - 1), (0, H2_PAD - H2)))                  # (8, 384) f32
    b3t = b3.reshape(1, 1)                                                     # (1, 1)   f32
    return (w1t, b1t, w2t, b2t, w3t, b3t)


def _pick_tile_b(batch):
    """Batch tile: 256-multiples (v6e/v7x MXU width), at least 2 tiles once the
    batch is big enough (v7x has 2 TensorCores; batch axis is "parallel"),
    capped at 512 to stay well inside v5e's 16 MiB scoped VMEM."""
    if batch <= 256:
        return 256
    half = -(-batch // 2)                    # ceil(batch / 2)
    return min(512, -(-half // 256) * 256)   # round up to 256-multiple, cap 512


def critic_forward(x, u, prepared):
    w1t, b1t, w2t, b2t, w3t, b3t = prepared
    B = x.shape[0]
    SA = x.shape[1] + u.shape[1]

    tile_b = _pick_tile_b(B)
    num_tiles = pl.cdiv(B, tile_b)
    b_pad = num_tiles * tile_b

    # Single fused wrapper prep: concat + bf16 cast (+ tail pad) + transpose.
    # ~32 B/row of traffic vs. ~580 B/row in the previous padded-slab design.
    xu = jnp.concatenate([x, u], axis=1).astype(jnp.bfloat16)
    if b_pad != B:
        xu = jnp.pad(xu, ((0, b_pad - B), (0, 0)))
    xu_t = xu.T                                                  # (S+A, b_pad)

    def resident(a):  # whole-array block, constant index -> VMEM-resident across grid
        return pl.BlockSpec(a.shape, lambda i: (0,) * a.ndim)

    out = pl.pallas_call(
        critic_kernel,
        out_shape=jax.ShapeDtypeStruct((1, b_pad), jnp.float32),
        grid=(num_tiles,),
        in_specs=[
            pl.BlockSpec((SA, tile_b), lambda i: (0, i)),
            resident(w1t), resident(b1t), resident(w2t),
            resident(b2t), resident(w3t), resident(b3t),
        ],
        out_specs=pl.BlockSpec((1, tile_b), lambda i: (0, i)),
        compiler_params=pltpu.CompilerParams(
            dimension_semantics=("parallel",)),
    )(xu_t, w1t, b1t, w2t, b2t, w3t, b3t)

    return out[0, :B].reshape(B, 1)                              # (B, 1)


def critic_reference(x, u, params):
    (w1, b1), (w2, b2), (w3, b3) = params
    xu = jnp.concatenate([x, u], axis=1)
    h1 = jnp.maximum(xu @ w1 + b1, 0.0)
    h2 = jnp.maximum(h1 @ w2 + b2, 0.0)
    return h2 @ w3 + b3


if __name__ == "__main__":
    state_dim, action_dim, batch = 12, 4, 2

    key = jax.random.PRNGKey(0)
    kx, ku, kp = jax.random.split(key, 3)
    x = jax.random.normal(kx, (batch, state_dim), jnp.float32)
    u = jax.random.normal(ku, (batch, action_dim), jnp.float32)

    params = make_critic_params(state_dim, action_dim, kp)
    prepared = prepare_params(params)        # hoisted: done once, not per call

    forward = jax.jit(critic_forward)
    q = jax.block_until_ready(forward(x, u, prepared))

    q_ref = critic_reference(x, u, params)
    assert q.shape == (batch, 1), q.shape
    # bf16 weights/activations on layers 1-2 loosen agreement vs the f32 reference.
    assert jnp.allclose(q, q_ref, atol=2e-2, rtol=2e-2), (q, q_ref)

    print("KERNEL_OK")
</pallas_src>

<mosaic_0001>
module attributes {stable_mosaic.version = 11 : i64} {
  func.func @critic_kernel(%arg0: i32, %arg1: memref<16x256xbf16, #tpu.memory_space<vmem>>, %arg2: memref<512x16xbf16, #tpu.memory_space<vmem>>, %arg3: memref<512x1xf32, #tpu.memory_space<vmem>>, %arg4: memref<384x512xbf16, #tpu.memory_space<vmem>>, %arg5: memref<384x1xf32, #tpu.memory_space<vmem>>, %arg6: memref<8x384xf32, #tpu.memory_space<vmem>>, %arg7: memref<1x1xf32, #tpu.memory_space<vmem>>, %arg8: memref<1x256xf32, #tpu.memory_space<vmem>>) attributes {dimension_semantics = [#tpu.dimension_semantics<parallel>], iteration_bounds = array<i64: 1>, scalar_prefetch = 0 : i64, scratch_operands = 0 : i64, tpu.core_type = #tpu.core_type<tc>, window_params = [{transform_indices = @transform_0, window_bounds = array<i64: 16, 256>}, {pipeline_mode = #tpu.pipeline_mode<synchronous>, transform_indices = @transform_1, window_bounds = array<i64: 512, 16>}, {pipeline_mode = #tpu.pipeline_mode<synchronous>, transform_indices = @transform_2, window_bounds = array<i64: 512, 1>}, {pipeline_mode = #tpu.pipeline_mode<synchronous>, transform_indices = @transform_3, window_bounds = array<i64: 384, 512>}, {pipeline_mode = #tpu.pipeline_mode<synchronous>, transform_indices = @transform_4, window_bounds = array<i64: 384, 1>}, {pipeline_mode = #tpu.pipeline_mode<synchronous>, transform_indices = @transform_5, window_bounds = array<i64: 8, 384>}, {pipeline_mode = #tpu.pipeline_mode<synchronous>, transform_indices = @transform_6, window_bounds = array<i64: 1, 1>}, {transform_indices = @transform_7, window_bounds = array<i64: 1, 256>}]} {
    %c0 = arith.constant 0 : index
    %c0_0 = arith.constant 0 : index
    %0 = vector.load %arg2[%c0, %c0_0] : memref<512x16xbf16, #tpu.memory_space<vmem>>, vector<512x16xbf16>
    %c0_1 = arith.constant 0 : index
    %c0_2 = arith.constant 0 : index
    %1 = vector.load %arg1[%c0_1, %c0_2] : memref<16x256xbf16, #tpu.memory_space<vmem>>, vector<16x256xbf16>
    %cst = arith.constant dense<0.000000e+00> : vector<512x256xf32>
    %2 = tpu.matmul %0, %1, %cst {dimension_numbers = #tpu.dot_dimension_numbers<[1], [0], [0], [1], [0, 0, 1, 1], [], []>} : vector<512x16xbf16>, vector<16x256xbf16>, vector<512x256xf32> -> vector<512x256xf32>
    %c0_3 = arith.constant 0 : index
    %c0_4 = arith.constant 0 : index
    %3 = vector.load %arg3[%c0_3, %c0_4] : memref<512x1xf32, #tpu.memory_space<vmem>>, vector<512x1xf32>
    %4 = vector.broadcast %3 : vector<512x1xf32> to vector<512x256xf32>
    %5 = arith.addf %2, %4 : vector<512x256xf32>
    %cst_5 = arith.constant 0.000000e+00 : f32
    %6 = vector.broadcast %cst_5 : f32 to vector<512x256xf32>
    %7 = arith.maximumf %5, %6 : vector<512x256xf32>
    %c0_6 = arith.constant 0 : index
    %c0_7 = arith.constant 0 : index
    %8 = vector.load %arg4[%c0_6, %c0_7] : memref<384x512xbf16, #tpu.memory_space<vmem>>, vector<384x512xbf16>
    %9 = arith.truncf %7 : vector<512x256xf32> to vector<512x256xbf16>
    %cst_8 = arith.constant dense<0.000000e+00> : vector<384x256xf32>
    %10 = tpu.matmul %8, %9, %cst_8 {dimension_numbers = #tpu.dot_dimension_numbers<[1], [0], [0], [1], [0, 0, 1, 1], [], []>} : vector<384x512xbf16>, vector<512x256xbf16>, vector<384x256xf32> -> vector<384x256xf32>
    %c0_9 = arith.constant 0 : index
    %c0_10 = arith.constant 0 : index
    %11 = vector.load %arg5[%c0_9, %c0_10] : memref<384x1xf32, #tpu.memory_space<vmem>>, vector<384x1xf32>
    %12 = vector.broadcast %11 : vector<384x1xf32> to vector<384x256xf32>
    %13 = arith.addf %10, %12 : vector<384x256xf32>
    %cst_11 = arith.constant 0.000000e+00 : f32
    %14 = vector.broadcast %cst_11 : f32 to vector<384x256xf32>
    %15 = arith.maximumf %13, %14 : vector<384x256xf32>
    %c0_12 = arith.constant 0 : index
    %c0_13 = arith.constant 0 : index
    %16 = vector.load %arg6[%c0_12, %c0_13] : memref<8x384xf32, #tpu.memory_space<vmem>>, vector<8x384xf32>
    %cst_14 = arith.constant dense<0.000000e+00> : vector<8x256xf32>
    %17 = tpu.matmul %16, %15, %cst_14 {dimension_numbers = #tpu.dot_dimension_numbers<[1], [0], [0], [1], [0, 0, 1, 1], [], []>} : vector<8x384xf32>, vector<384x256xf32>, vector<8x256xf32> -> vector<8x256xf32>
    %18 = vector.extract_strided_slice %17 {offsets = [0, 0], sizes = [1, 256], strides = [1, 1]} : vector<8x256xf32> to vector<1x256xf32>
    %c0_15 = arith.constant 0 : index
    %c0_16 = arith.constant 0 : index
    %19 = vector.load %arg7[%c0_15, %c0_16] : memref<1x1xf32, #tpu.memory_space<vmem>>, vector<1x1xf32>
    %20 = vector.broadcast %19 : vector<1x1xf32> to vector<1x256xf32>
    %21 = arith.addf %18, %20 : vector<1x256xf32>
    %c0_17 = arith.constant 0 : index
    %c0_18 = arith.constant 0 : index
    %22 = vector.load %arg8[%c0_17, %c0_18] : memref<1x256xf32, #tpu.memory_space<vmem>>, vector<1x256xf32>
    tpu.vector_store %arg8[%c0_17, %c0_18], %21 {strides = array<i32>} : memref<1x256xf32, #tpu.memory_space<vmem>>, vector<1x256xf32>,
    return
  }
  func.func @transform_0(%arg0: i32) -> (i32, i32) {
    %c0_i32 = arith.constant 0 : i32
    %c0_i32_0 = arith.constant 0 : i32
    return %c0_i32, %arg0 : i32, i32
  }
  func.func @transform_1(%arg0: i32) -> (i32, i32) {
    %c0_i32 = arith.constant 0 : i32
    %c0_i32_0 = arith.constant 0 : i32
    %c0_i32_1 = arith.constant 0 : i32
    return %c0_i32, %c0_i32_0 : i32, i32
  }
  func.func @transform_2(%arg0: i32) -> (i32, i32) {
    %c0_i32 = arith.constant 0 : i32
    %c0_i32_0 = arith.constant 0 : i32
    %c0_i32_1 = arith.constant 0 : i32
    return %c0_i32, %c0_i32_0 : i32, i32
  }
  func.func @transform_3(%arg0: i32) -> (i32, i32) {
    %c0_i32 = arith.constant 0 : i32
    %c0_i32_0 = arith.constant 0 : i32
    %c0_i32_1 = arith.constant 0 : i32
    return %c0_i32, %c0_i32_0 : i32, i32
  }
  func.func @transform_4(%arg0: i32) -> (i32, i32) {
    %c0_i32 = arith.constant 0 : i32
    %c0_i32_0 = arith.constant 0 : i32
    %c0_i32_1 = arith.constant 0 : i32
    return %c0_i32, %c0_i32_0 : i32, i32
  }
  func.func @transform_5(%arg0: i32) -> (i32, i32) {
    %c0_i32 = arith.constant 0 : i32
    %c0_i32_0 = arith.constant 0 : i32
    %c0_i32_1 = arith.constant 0 : i32
    return %c0_i32, %c0_i32_0 : i32, i32
  }
  func.func @transform_6(%arg0: i32) -> (i32, i32) {
    %c0_i32 = arith.constant 0 : i32
    %c0_i32_0 = arith.constant 0 : i32
    %c0_i32_1 = arith.constant 0 : i32
    return %c0_i32, %c0_i32_0 : i32, i32
  }
  func.func @transform_7(%arg0: i32) -> (i32, i32) {
    %c0_i32 = arith.constant 0 : i32
    %c0_i32_0 = arith.constant 0 : i32
    return %c0_i32, %arg0 : i32, i32
  }
}

</mosaic_0001>

<llo_original>
// kernel: critic_forward.1
$region0: #{critic_forward.1}
  #allocation0 [shape = 'u32[]', space=smem, size = 0x4, offset = 0x4, fixed_abs, tag = 'smem constant byte address 0x4 - core index']
  #allocation1 [shape = 'u32[72,128]{1,0:T(1,128)}', space=vmem, size = 0x9000, scoped, tag = 'internal scratch']
  #allocation2 [shape = 'f32[1,1]{1,0:T(1,128)S(1)}', space=vmem, size = 0x200, scoped, tag = 'scoped memory for critic_forward.1']
  %s0 = inlined_call_operand.vmem [shape: bf16[16,256], index: 0, kind: input, shape index: {}]
  %s1 = inlined_call_operand.vmem [shape: bf16[512,16], index: 1, kind: input, shape index: {}]
  %s2 = inlined_call_operand.vmem [shape: f32[512,1], index: 2, kind: input, shape index: {}]
  %s3 = inlined_call_operand.vmem [shape: bf16[384,512], index: 3, kind: input, shape index: {}]
  %s4 = inlined_call_operand.vmem [shape: f32[384,1], index: 4, kind: input, shape index: {}]
  %s5 = inlined_call_operand.vmem [shape: f32[8,384], index: 5, kind: input, shape index: {}]
  %s6 = inlined_call_operand.<no memory space> [shape: f32[1,1], index: 6, kind: input, shape index: {}]
  %s7 = inlined_call_operand.vmem [shape: f32[1,256], index: 7, kind: output, shape index: {}]
  %s8 = sld [smem:[#allocation0]]
  $region38: #{critic_forward.1} parent=0
    _
  %s10 = ssub.s32 1, %s8
  %s11 = scalar_select 0, %s10, %s8
  %v12 = vstv %s6
  %13 = vst [vmem:[#allocation2] sm:$0x1] %v12
  // Predicated region
  $region2: #{critic_forward.1} parent=0 // pred_check
    _
  $region3: #{critic_forward.1} parent=0 // pred_check_branch
    %15 = sbr.rel (0) target = $region5
  $region4: #{critic_forward.1} parent=0 // pred_region
    _
  $region5: #{critic_forward.1} parent=0 // pred_fallthru
    _
  // Predicated region
  $region6: #{critic_forward.1} parent=0 // pred_check
    _
  $region7: #{critic_forward.1} parent=0 // pred_check_branch
    %17 = sbr.rel (0) target = $region9
  $region8: #{critic_forward.1} parent=0 // pred_region
    _
  $region9: #{critic_forward.1} parent=0 // pred_fallthru
    _
  // Predicated region
  $region10: #{critic_forward.1} parent=0 // pred_check
    _
  $region11: #{critic_forward.1} parent=0 // pred_check_branch
    %19 = sbr.rel (0) target = $region13
  $region12: #{critic_forward.1} parent=0 // pred_region
    _
  $region13: #{critic_forward.1} parent=0 // pred_fallthru
    _
  // Predicated region
  $region14: #{critic_forward.1} parent=0 // pred_check
    _
  $region15: #{critic_forward.1} parent=0 // pred_check_branch
    %21 = sbr.rel (0) target = $region17
  $region16: #{critic_forward.1} parent=0 // pred_region
    _
  $region17: #{critic_forward.1} parent=0 // pred_fallthru
    _
  // Predicated region
  $region18: #{critic_forward.1} parent=0 // pred_check
    _
  $region19: #{critic_forward.1} parent=0 // pred_check_branch
    %23 = sbr.rel (0) target = $region21
  $region20: #{critic_forward.1} parent=0 // pred_region
    _
  $region21: #{critic_forward.1} parent=0 // pred_fallthru
    _
  // Predicated region
  $region22: #{critic_forward.1} parent=0 // pred_check
    _
  $region23: #{critic_forward.1} parent=0 // pred_check_branch
    %25 = sbr.rel (0) target = $region25
  $region24: #{critic_forward.1} parent=0 // pred_region
    _
  $region25: #{critic_forward.1} parent=0 // pred_fallthru
    _
  // Predicated region
  $region26: #{critic_forward.1} parent=0 // pred_check
    _
  $region27: #{critic_forward.1} parent=0 // pred_check_branch
    %27 = sbr.rel (0) target = $region29
  $region28: #{critic_forward.1} parent=0 // pred_region
    _
  $region29: #{critic_forward.1} parent=0 // pred_fallthru
    _
  %v29 = vld [vmem:[%s1] sm:$0xf]
  %v30 = vld [vmem:[%s1 + $0x4] sm:$0xf]
  %v31 = vld [vmem:[%s1 + $0x8] sm:$0xf]
  %v32 = vld [vmem:[%s1 + $0xc] sm:$0xf]
  %v33 = vld [vmem:[%s1 + $0x10] sm:$0xf]
  %v34 = vld [vmem:[%s1 + $0x14] sm:$0xf]
  %v35 = vld [vmem:[%s1 + $0x18] sm:$0xf]
  %v36 = vld [vmem:[%s1 + $0x1c] sm:$0xf]
  %v37 = vld [vmem:[%s1 + $0x20] sm:$0xf]
  %v38 = vld [vmem:[%s1 + $0x24] sm:$0xf]
  %v39 = vld [vmem:[%s1 + $0x28] sm:$0xf]
  %v40 = vld [vmem:[%s1 + $0x2c] sm:$0xf]
  %v41 = vld [vmem:[%s1 + $0x30] sm:$0xf]
  %v42 = vld [vmem:[%s1 + $0x34] sm:$0xf]
  %v43 = vld [vmem:[%s1 + $0x38] sm:$0xf]
  %v44 = vld [vmem:[%s1 + $0x3c] sm:$0xf]
  %v45 = vld [vmem:[%s1 + $0x40] sm:$0xf]
  %v46 = vld [vmem:[%s1 + $0x44] sm:$0xf]
  %v47 = vld [vmem:[%s1 + $0x48] sm:$0xf]
  %v48 = vld [vmem:[%s1 + $0x4c] sm:$0xf]
  %v49 = vld [vmem:[%s1 + $0x50] sm:$0xf]
  %v50 = vld [vmem:[%s1 + $0x54] sm:$0xf]
  %v51 = vld [vmem:[%s1 + $0x58] sm:$0xf]
  %v52 = vld [vmem:[%s1 + $0x5c] sm:$0xf]
  %v53 = vld [vmem:[%s1 + $0x60] sm:$0xf]
  %v54 = vld [vmem:[%s1 + $0x64] sm:$0xf]
  %v55 = vld [vmem:[%s1 + $0x68] sm:$0xf]
  %v56 = vld [vmem:[%s1 + $0x6c] sm:$0xf]
  %v57 = vld [vmem:[%s1 + $0x70] sm:$0xf]
  %v58 = vld [vmem:[%s1 + $0x74] sm:$0xf]
  %v59 = vld [vmem:[%s1 + $0x78] sm:$0xf]
  %v60 = vld [vmem:[%s1 + $0x7c] sm:$0xf]
  %v61 = vld [vmem:[%s1 + $0x80] sm:$0xf]
  %v62 = vld [vmem:[%s1 + $0x84] sm:$0xf]
  %v63 = vld [vmem:[%s1 + $0x88] sm:$0xf]
  %v64 = vld [vmem:[%s1 + $0x8c] sm:$0xf]
  %v65 = vld [vmem:[%s1 + $0x90] sm:$0xf]
  %v66 = vld [vmem:[%s1 + $0x94] sm:$0xf]
  %v67 = vld [vmem:[%s1 + $0x98] sm:$0xf]
  %v68 = vld [vmem:[%s1 + $0x9c] sm:$0xf]
  %v69 = vld [vmem:[%s1 + $0xa0] sm:$0xf]
  %v70 = vld [vmem:[%s1 + $0xa4] sm:$0xf]
  %v71 = vld [vmem:[%s1 + $0xa8] sm:$0xf]
  %v72 = vld [vmem:[%s1 + $0xac] sm:$0xf]
  %v73 = vld [vmem:[%s1 + $0xb0] sm:$0xf]
  %v74 = vld [vmem:[%s1 + $0xb4] sm:$0xf]
  %v75 = vld [vmem:[%s1 + $0xb8] sm:$0xf]
  %v76 = vld [vmem:[%s1 + $0xbc] sm:$0xf]
  %v77 = vld [vmem:[%s1 + $0xc0] sm:$0xf]
  %v78 = vld [vmem:[%s1 + $0xc4] sm:$0xf]
  %v79 = vld [vmem:[%s1 + $0xc8] sm:$0xf]
  %v80 = vld [vmem:[%s1 + $0xcc] sm:$0xf]
  %v81 = vld [vmem:[%s1 + $0xd0] sm:$0xf]
  %v82 = vld [vmem:[%s1 + $0xd4] sm:$0xf]
  %v83 = vld [vmem:[%s1 + $0xd8] sm:$0xf]
  %v84 = vld [vmem:[%s1 + $0xdc] sm:$0xf]
  %v85 = vld [vmem:[%s1 + $0xe0] sm:$0xf]
  %v86 = vld [vmem:[%s1 + $0xe4] sm:$0xf]
  %v87 = vld [vmem:[%s1 + $0xe8] sm:$0xf]
  %v88 = vld [vmem:[%s1 + $0xec] sm:$0xf]
  %v89 = vld [vmem:[%s1 + $0xf0] sm:$0xf]
  %v90 = vld [vmem:[%s1 + $0xf4] sm:$0xf]
  %v91 = vld [vmem:[%s1 + $0xf8] sm:$0xf]
  %v92 = vld [vmem:[%s1 + $0xfc] sm:$0xf]
  %v93 = vld [vmem:[%s0] sm:$0xff]
  %v94 = vld [vmem:[%s0 + $0x8] sm:$0xff]
  %v95 = vld [vmem:[%s2] sm:$0xff]
  %v96 = vld [vmem:[%s2 + $0x8] sm:$0xff]
  %v97 = vld [vmem:[%s2 + $0x10] sm:$0xff]
  %v98 = vld [vmem:[%s2 + $0x18] sm:$0xff]
  %v99 = vld [vmem:[%s2 + $0x20] sm:$0xff]
  %v100 = vld [vmem:[%s2 + $0x28] sm:$0xff]
  %v101 = vld [vmem:[%s2 + $0x30] sm:$0xff]
  %v102 = vld [vmem:[%s2 + $0x38] sm:$0xff]
  %v103 = vld [vmem:[%s2 + $0x40] sm:$0xff]
  %v104 = vld [vmem:[%s2 + $0x48] sm:$0xff]
  %v105 = vld [vmem:[%s2 + $0x50] sm:$0xff]
  %v106 = vld [vmem:[%s2 + $0x58] sm:$0xff]
  %v107 = vld [vmem:[%s2 + $0x60] sm:$0xff]
  %v108 = vld [vmem:[%s2 + $0x68] sm:$0xff]
  %v109 = vld [vmem:[%s2 + $0x70] sm:$0xff]
  %v110 = vld [vmem:[%s2 + $0x78] sm:$0xff]
  %v111 = vld [vmem:[%s2 + $0x80] sm:$0xff]
  %v112 = vld [vmem:[%s2 + $0x88] sm:$0xff]
  %v113 = vld [vmem:[%s2 + $0x90] sm:$0xff]
  %v114 = vld [vmem:[%s2 + $0x98] sm:$0xff]
  %v115 = vld [vmem:[%s2 + $0xa0] sm:$0xff]
  %v116 = vld [vmem:[%s2 + $0xa8] sm:$0xff]
  %v117 = vld [vmem:[%s2 + $0xb0] sm:$0xff]
  %v118 = vld [vmem:[%s2 + $0xb8] sm:$0xff]
  %v119 = vld [vmem:[%s2 + $0xc0] sm:$0xff]
  %v120 = vld [vmem:[%s2 + $0xc8] sm:$0xff]
  %v121 = vld [vmem:[%s2 + $0xd0] sm:$0xff]
  %v122 = vld [vmem:[%s2 + $0xd8] sm:$0xff]
  %v123 = vld [vmem:[%s2 + $0xe0] sm:$0xff]
  %v124 = vld [vmem:[%s2 + $0xe8] sm:$0xff]
  %v125 = vld [vmem:[%s2 + $0xf0] sm:$0xff]
  %v126 = vld [vmem:[%s2 + $0xf8] sm:$0xff]
  %v127 = vld [vmem:[%s2 + $0x100] sm:$0xff]
  %v128 = vld [vmem:[%s2 + $0x108] sm:$0xff]
  %v129 = vld [vmem:[%s2 + $0x110] sm:$0xff]
  %v130 = vld [vmem:[%s2 + $0x118] sm:$0xff]
  %v131 = vld [vmem:[%s2 + $0x120] sm:$0xff]
  %v132 = vld [vmem:[%s2 + $0x128] sm:$0xff]
  %v133 = vld [vmem:[%s2 + $0x130] sm:$0xff]
  %v134 = vld [vmem:[%s2 + $0x138] sm:$0xff]
  %v135 = vld [vmem:[%s2 + $0x140] sm:$0xff]
  %v136 = vld [vmem:[%s2 + $0x148] sm:$0xff]
  %v137 = vld [vmem:[%s2 + $0x150] sm:$0xff]
  %v138 = vld [vmem:[%s2 + $0x158] sm:$0xff]
  %v139 = vld [vmem:[%s2 + $0x160] sm:$0xff]
  %v140 = vld [vmem:[%s2 + $0x168] sm:$0xff]
  %v141 = vld [vmem:[%s2 + $0x170] sm:$0xff]
  %v142 = vld [vmem:[%s2 + $0x178] sm:$0xff]
  %v143 = vld [vmem:[%s2 + $0x180] sm:$0xff]
  %v144 = vld [vmem:[%s2 + $0x188] sm:$0xff]
  %v145 = vld [vmem:[%s2 + $0x190] sm:$0xff]
  %v146 = vld [vmem:[%s2 + $0x198] sm:$0xff]
  %v147 = vld [vmem:[%s2 + $0x1a0] sm:$0xff]
  %v148 = vld [vmem:[%s2 + $0x1a8] sm:$0xff]
  %v149 = vld [vmem:[%s2 + $0x1b0] sm:$0xff]
  %v150 = vld [vmem:[%s2 + $0x1b8] sm:$0xff]
  %v151 = vld [vmem:[%s2 + $0x1c0] sm:$0xff]
  %v152 = vld [vmem:[%s2 + $0x1c8] sm:$0xff]
  %v153 = vld [vmem:[%s2 + $0x1d0] sm:$0xff]
  %v154 = vld [vmem:[%s2 + $0x1d8] sm:$0xff]
  %v155 = vld [vmem:[%s2 + $0x1e0] sm:$0xff]
  %v156 = vld [vmem:[%s2 + $0x1e8] sm:$0xff]
  %v157 = vld [vmem:[%s2 + $0x1f0] sm:$0xff]
  %v158 = vld [vmem:[%s2 + $0x1f8] sm:$0xff]
  %160 = vset.pattern.permute.xlu0 0
  %161 = vperm.xlu0 %160, %v95
  %v162 = vpop.permute.xlu0 %161
  %165 = vset.pattern.permute.xlu0 0
  %166 = vperm.xlu0 %165, %v96
  %v167 = vpop.permute.xlu0 %166
  %170 = vset.pattern.permute.xlu0 0
  %171 = vperm.xlu0 %170, %v97
  %v172 = vpop.permute.xlu0 %171
  %175 = vset.pattern.permute.xlu0 0
  %176 = vperm.xlu0 %175, %v98
  %v177 = vpop.permute.xlu0 %176
  %180 = vset.pattern.permute.xlu0 0
  %181 = vperm.xlu0 %180, %v99
  %v182 = vpop.permute.xlu0 %181
  %185 = vset.pattern.permute.xlu0 0
  %186 = vperm.xlu0 %185, %v100
  %v187 = vpop.permute.xlu0 %186
  %190 = vset.pattern.permute.xlu0 0
  %191 = vperm.xlu0 %190, %v101
  %v192 = vpop.permute.xlu0 %191
  %195 = vset.pattern.permute.xlu0 0
  %196 = vperm.xlu0 %195, %v102
  %v197 = vpop.permute.xlu0 %196
  %200 = vset.pattern.permute.xlu0 0
  %201 = vperm.xlu0 %200, %v103
  %v202 = vpop.permute.xlu0 %201
  %205 = vset.pattern.permute.xlu0 0
  %206 = vperm.xlu0 %205, %v104
  %v207 = vpop.permute.xlu0 %206
  %210 = vset.pattern.permute.xlu0 0
  %211 = vperm.xlu0 %210, %v105
  %v212 = vpop.permute.xlu0 %211
  %215 = vset.pattern.permute.xlu0 0
  %216 = vperm.xlu0 %215, %v106
  %v217 = vpop.permute.xlu0 %216
  %220 = vset.pattern.permute.xlu0 0
  %221 = vperm.xlu0 %220, %v107
  %v222 = vpop.permute.xlu0 %221
  %225 = vset.pattern.permute.xlu0 0
  %226 = vperm.xlu0 %225, %v108
  %v227 = vpop.permute.xlu0 %226
  %230 = vset.pattern.permute.xlu0 0
  %231 = vperm.xlu0 %230, %v109
  %v232 = vpop.permute.xlu0 %231
  %235 = vset.pattern.permute.xlu0 0
  %236 = vperm.xlu0 %235, %v110
  %v237 = vpop.permute.xlu0 %236
  %240 = vset.pattern.permute.xlu0 0
  %241 = vperm.xlu0 %240, %v111
  %v242 = vpop.permute.xlu0 %241
  %245 = vset.pattern.permute.xlu0 0
  %246 = vperm.xlu0 %245, %v112
  %v247 = vpop.permute.xlu0 %246
  %250 = vset.pattern.permute.xlu0 0
  %251 = vperm.xlu0 %250, %v113
  %v252 = vpop.permute.xlu0 %251
  %255 = vset.pattern.permute.xlu0 0
  %256 = vperm.xlu0 %255, %v114
  %v257 = vpop.permute.xlu0 %256
  %260 = vset.pattern.permute.xlu0 0
  %261 = vperm.xlu0 %260, %v115
  %v262 = vpop.permute.xlu0 %261
  %265 = vset.pattern.permute.xlu0 0
  %266 = vperm.xlu0 %265, %v116
  %v267 = vpop.permute.xlu0 %266
  %270 = vset.pattern.permute.xlu0 0
  %271 = vperm.xlu0 %270, %v117
  %v272 = vpop.permute.xlu0 %271
  %275 = vset.pattern.permute.xlu0 0
  %276 = vperm.xlu0 %275, %v118
  %v277 = vpop.permute.xlu0 %276
  %280 = vset.pattern.permute.xlu0 0
  %281 = vperm.xlu0 %280, %v119
  %v282 = vpop.permute.xlu0 %281
  %285 = vset.pattern.permute.xlu0 0
  %286 = vperm.xlu0 %285, %v120
  %v287 = vpop.permute.xlu0 %286
  %290 = vset.pattern.permute.xlu0 0
  %291 = vperm.xlu0 %290, %v121
  %v292 = vpop.permute.xlu0 %291
  %295 = vset.pattern.permute.xlu0 0
  %296 = vperm.xlu0 %295, %v122
  %v297 = vpop.permute.xlu0 %296
  %300 = vset.pattern.permute.xlu0 0
  %301 = vperm.xlu0 %300, %v123
  %v302 = vpop.permute.xlu0 %301
  %305 = vset.pattern.permute.xlu0 0
  %306 = vperm.xlu0 %305, %v124
  %v307 = vpop.permute.xlu0 %306
  %310 = vset.pattern.permute.xlu0 0
  %311 = vperm.xlu0 %310, %v125
  %v312 = vpop.permute.xlu0 %311
  %315 = vset.pattern.permute.xlu0 0
  %316 = vperm.xlu0 %315, %v126
  %v317 = vpop.permute.xlu0 %316
  %320 = vset.pattern.permute.xlu0 0
  %321 = vperm.xlu0 %320, %v127
  %v322 = vpop.permute.xlu0 %321
  %325 = vset.pattern.permute.xlu0 0
  %326 = vperm.xlu0 %325, %v128
  %v327 = vpop.permute.xlu0 %326
  %330 = vset.pattern.permute.xlu0 0
  %331 = vperm.xlu0 %330, %v129
  %v332 = vpop.permute.xlu0 %331
  %335 = vset.pattern.permute.xlu0 0
  %336 = vperm.xlu0 %335, %v130
  %v337 = vpop.permute.xlu0 %336
  %340 = vset.pattern.permute.xlu0 0
  %341 = vperm.xlu0 %340, %v131
  %v342 = vpop.permute.xlu0 %341
  %345 = vset.pattern.permute.xlu0 0
  %346 = vperm.xlu0 %345, %v132
  %v347 = vpop.permute.xlu0 %346
  %350 = vset.pattern.permute.xlu0 0
  %351 = vperm.xlu0 %350, %v133
  %v352 = vpop.permute.xlu0 %351
  %355 = vset.pattern.permute.xlu0 0
  %356 = vperm.xlu0 %355, %v134
  %v357 = vpop.permute.xlu0 %356
  %360 = vset.pattern.permute.xlu0 0
  %361 = vperm.xlu0 %360, %v135
  %v362 = vpop.permute.xlu0 %361
  %365 = vset.pattern.permute.xlu0 0
  %366 = vperm.xlu0 %365, %v136
  %v367 = vpop.permute.xlu0 %366
  %370 = vset.pattern.permute.xlu0 0
  %371 = vperm.xlu0 %370, %v137
  %v372 = vpop.permute.xlu0 %371
  %375 = vset.pattern.permute.xlu0 0
  %376 = vperm.xlu0 %375, %v138
  %v377 = vpop.permute.xlu0 %376
  %380 = vset.pattern.permute.xlu0 0
  %381 = vperm.xlu0 %380, %v139
  %v382 = vpop.permute.xlu0 %381
  %385 = vset.pattern.permute.xlu0 0
  %386 = vperm.xlu0 %385, %v140
  %v387 = vpop.permute.xlu0 %386
  %390 = vset.pattern.permute.xlu0 0
  %391 = vperm.xlu0 %390, %v141
  %v392 = vpop.permute.xlu0 %391
  %395 = vset.pattern.permute.xlu0 0
  %396 = vperm.xlu0 %395, %v142
  %v397 = vpop.permute.xlu0 %396
  %400 = vset.pattern.permute.xlu0 0
  %401 = vperm.xlu0 %400, %v143
  %v402 = vpop.permute.xlu0 %401
  %405 = vset.pattern.permute.xlu0 0
  %406 = vperm.xlu0 %405, %v144
  %v407 = vpop.permute.xlu0 %406
  %410 = vset.pattern.permute.xlu0 0
  %411 = vperm.xlu0 %410, %v145
  %v412 = vpop.permute.xlu0 %411
  %415 = vset.pattern.permute.xlu0 0
  %416 = vperm.xlu0 %415, %v146
  %v417 = vpop.permute.xlu0 %416
  %420 = vset.pattern.permute.xlu0 0
  %421 = vperm.xlu0 %420, %v147
  %v422 = vpop.permute.xlu0 %421
  %425 = vset.pattern.permute.xlu0 0
  %426 = vperm.xlu0 %425, %v148
  %v427 = vpop.permute.xlu0 %426
  %430 = vset.pattern.permute.xlu0 0
  %431 = vperm.xlu0 %430, %v149
  %v432 = vpop.permute.xlu0 %431
  %435 = vset.pattern.permute.xlu0 0
  %436 = vperm.xlu0 %435, %v150
  %v437 = vpop.permute.xlu0 %436
  %440 = vset.pattern.permute.xlu0 0
  %441 = vperm.xlu0 %440, %v151
  %v442 = vpop.permute.xlu0 %441
  %445 = vset.pattern.permute.xlu0 0
  %446 = vperm.xlu0 %445, %v152
  %v447 = vpop.permute.xlu0 %446
  %450 = vset.pattern.permute.xlu0 0
  %451 = vperm.xlu0 %450, %v153
  %v452 = vpop.permute.xlu0 %451
  %455 = vset.pattern.permute.xlu0 0
  %456 = vperm.xlu0 %455, %v154
  %v457 = vpop.permute.xlu0 %456
  %460 = vset.pattern.permute.xlu0 0
  %461 = vperm.xlu0 %460, %v155
  %v462 = vpop.permute.xlu0 %461
  %465 = vset.pattern.permute.xlu0 0
  %466 = vperm.xlu0 %465, %v156
  %v467 = vpop.permute.xlu0 %466
  %470 = vset.pattern.permute.xlu0 0
  %471 = vperm.xlu0 %470, %v157
  %v472 = vpop.permute.xlu0 %471
  %475 = vset.pattern.permute.xlu0 0
  %476 = vperm.xlu0 %475, %v158
  %v477 = vpop.permute.xlu0 %476
  %v543 = vunpack.c.l.b16 %v29
  %v544 = vunpack.c.l.b16 %v30
  %v545 = vunpack.c.l.b16 %v31
  %v546 = vunpack.c.l.b16 %v32
  %v547 = vunpack.c.l.b16 %v33
  %v548 = vunpack.c.l.b16 %v34
  %v549 = vunpack.c.l.b16 %v35
  %v550 = vunpack.c.l.b16 %v36
  %v551 = vunpack.c.l.b16 %v37
  %v552 = vunpack.c.l.b16 %v38
  %v553 = vunpack.c.l.b16 %v39
  %v554 = vunpack.c.l.b16 %v40
  %v555 = vunpack.c.l.b16 %v41
  %v556 = vunpack.c.l.b16 %v42
  %v557 = vunpack.c.l.b16 %v43
  %v558 = vunpack.c.l.b16 %v44
  %v559 = vunpack.c.l.b16 %v45
  %v560 = vunpack.c.l.b16 %v46
  %v561 = vunpack.c.l.b16 %v47
  %v562 = vunpack.c.l.b16 %v48
  %v563 = vunpack.c.l.b16 %v49
  %v564 = vunpack.c.l.b16 %v50
  %v565 = vunpack.c.l.b16 %v51
  %v566 = vunpack.c.l.b16 %v52
  %v567 = vunpack.c.l.b16 %v53
  %v568 = vunpack.c.l.b16 %v54
  %v569 = vunpack.c.l.b16 %v55
  %v570 = vunpack.c.l.b16 %v56
  %v571 = vunpack.c.l.b16 %v57
  %v572 = vunpack.c.l.b16 %v58
  %v573 = vunpack.c.l.b16 %v59
  %v574 = vunpack.c.l.b16 %v60
  %v575 = vunpack.c.l.b16 %v61
  %v576 = vunpack.c.l.b16 %v62
  %v577 = vunpack.c.l.b16 %v63
  %v578 = vunpack.c.l.b16 %v64
  %v579 = vunpack.c.l.b16 %v65
  %v580 = vunpack.c.l.b16 %v66
  %v581 = vunpack.c.l.b16 %v67
  %v582 = vunpack.c.l.b16 %v68
  %v583 = vunpack.c.l.b16 %v69
  %v584 = vunpack.c.l.b16 %v70
  %v585 = vunpack.c.l.b16 %v71
  %v586 = vunpack.c.l.b16 %v72
  %v587 = vunpack.c.l.b16 %v73
  %v588 = vunpack.c.l.b16 %v74
  %v589 = vunpack.c.l.b16 %v75
  %v590 = vunpack.c.l.b16 %v76
  %v591 = vunpack.c.l.b16 %v77
  %v592 = vunpack.c.l.b16 %v78
  %v593 = vunpack.c.l.b16 %v79
  %v594 = vunpack.c.l.b16 %v80
  %v595 = vunpack.c.l.b16 %v81
  %v596 = vunpack.c.l.b16 %v82
  %v597 = vunpack.c.l.b16 %v83
  %v598 = vunpack.c.l.b16 %v84
  %v599 = vunpack.c.l.b16 %v85
  %v600 = vunpack.c.l.b16 %v86
  %v601 = vunpack.c.l.b16 %v87
  %v602 = vunpack.c.l.b16 %v88
  %v603 = vunpack.c.l.b16 %v89
  %v604 = vunpack.c.l.b16 %v90
  %v605 = vunpack.c.l.b16 %v91
  %v606 = vunpack.c.l.b16 %v92
  %v607 = vpack.c.b16 %v544, %v543
  %v608 = vpack.c.b16 %v546, %v545
  %v609 = vpack.c.b16 %v548, %v547
  %v610 = vpack.c.b16 %v550, %v549
  %v611 = vpack.c.b16 %v552, %v551
  %v612 = vpack.c.b16 %v554, %v553
  %v613 = vpack.c.b16 %v556, %v555
  %v614 = vpack.c.b16 %v558, %v557
  %v615 = vpack.c.b16 %v560, %v559
  %v616 = vpack.c.b16 %v562, %v561
  %v617 = vpack.c.b16 %v564, %v563
  %v618 = vpack.c.b16 %v566, %v565
  %v619 = vpack.c.b16 %v568, %v567
  %v620 = vpack.c.b16 %v570, %v569
  %v621 = vpack.c.b16 %v572, %v571
  %v622 = vpack.c.b16 %v574, %v573
  %v623 = vpack.c.b16 %v576, %v575
  %v624 = vpack.c.b16 %v578, %v577
  %v625 = vpack.c.b16 %v580, %v579
  %v626 = vpack.c.b16 %v582, %v581
  %v627 = vpack.c.b16 %v584, %v583
  %v628 = vpack.c.b16 %v586, %v585
  %v629 = vpack.c.b16 %v588, %v587
  %v630 = vpack.c.b16 %v590, %v589
  %v631 = vpack.c.b16 %v592, %v591
  %v632 = vpack.c.b16 %v594, %v593
  %v633 = vpack.c.b16 %v596, %v595
  %v634 = vpack.c.b16 %v598, %v597
  %v635 = vpack.c.b16 %v600, %v599
  %v636 = vpack.c.b16 %v602, %v601
  %v637 = vpack.c.b16 %v604, %v603
  %v638 = vpack.c.b16 %v606, %v605
  %v641 = vunpack.c.l.b16 %v93
  %v642 = vunpack.c.h.b16 %v93
  %v643 = vunpack.c.l.b16 %v94
  %v644 = vunpack.c.h.b16 %v94
  %v645 = vpack.c.b16 %v643, %v641
  %v646 = vpack.c.b16 %v644, %v642
  %vm649 = vcmask 130048
  %v651 = vsel %vm649, %v607, 0
  %v654 = vsel %vm649, %v608, 0
  %v657 = vsel %vm649, %v609, 0
  %v660 = vsel %vm649, %v610, 0
  %v663 = vsel %vm649, %v611, 0
  %v666 = vsel %vm649, %v612, 0
  %v669 = vsel %vm649, %v613, 0
  %v672 = vsel %vm649, %v614, 0
  %v675 = vsel %vm649, %v615, 0
  %v678 = vsel %vm649, %v616, 0
  %v681 = vsel %vm649, %v617, 0
  %v684 = vsel %vm649, %v618, 0
  %v687 = vsel %vm649, %v619, 0
  %v690 = vsel %vm649, %v620, 0
  %v693 = vsel %vm649, %v621, 0
  %v696 = vsel %vm649, %v622, 0
  %v699 = vsel %vm649, %v623, 0
  %v702 = vsel %vm649, %v624, 0
  %v705 = vsel %vm649, %v625, 0
  %v708 = vsel %vm649, %v626, 0
  %v711 = vsel %vm649, %v627, 0
  %v714 = vsel %vm649, %v628, 0
  %v717 = vsel %vm649, %v629, 0
  %v720 = vsel %vm649, %v630, 0
  %v723 = vsel %vm649, %v631, 0
  %v726 = vsel %vm649, %v632, 0
  %v729 = vsel %vm649, %v633, 0
  %v732 = vsel %vm649, %v634, 0
  %v735 = vsel %vm649, %v635, 0
  %v738 = vsel %vm649, %v636, 0
  %v741 = vsel %vm649, %v637, 0
  %v744 = vsel %vm649, %v638, 0
  %746 = vmatpush.bf16.msra.mxu0 0
  %747 = vmatpush.bf16.msra.mxu0 0
  %748 = vmatpush.bf16.msra.mxu0 0
  %749 = vmatpush.bf16.msra.mxu0 0
  %750 = vmatpush.bf16.msra.mxu0 0
  %751 = vmatpush.bf16.msra.mxu0 0
  %752 = vmatpush.bf16.msra.mxu0 0
  %753 = vmatpush.bf16.msra.mxu0 %v645
  %754 = vmatmul.bf16.gmra.mxu0 %v651
  %v755 = vpop.f32.mrf.mxu0
  %v756 = vadd.f32 %v162, %v755
  %v757 = vpop.f32.mrf.mxu0
  %v758 = vadd.f32 %v167, %v757
  %759 = vmatmul.bf16.gmra.mxu0 %v654
  %v760 = vpop.f32.mrf.mxu0
  %v761 = vadd.f32 %v172, %v760
  %v762 = vpop.f32.mrf.mxu0
  %v763 = vadd.f32 %v177, %v762
  %764 = vmatmul.bf16.gmra.mxu0 %v657
  %v765 = vpop.f32.mrf.mxu0
  %v766 = vadd.f32 %v182, %v765
  %v767 = vpop.f32.mrf.mxu0
  %v768 = vadd.f32 %v187, %v767
  %769 = vmatmul.bf16.gmra.mxu0 %v660
  %v770 = vpop.f32.mrf.mxu0
  %v771 = vadd.f32 %v192, %v770
  %v772 = vpop.f32.mrf.mxu0
  %v773 = vadd.f32 %v197, %v772
  %774 = vmatmul.bf16.gmra.mxu0 %v663
  %v775 = vpop.f32.mrf.mxu0
  %v776 = vadd.f32 %v202, %v775
  %v777 = vpop.f32.mrf.mxu0
  %v778 = vadd.f32 %v207, %v777
  %779 = vmatmul.bf16.gmra.mxu0 %v666
  %v780 = vpop.f32.mrf.mxu0
  %v781 = vadd.f32 %v212, %v780
  %v782 = vpop.f32.mrf.mxu0
  %v783 = vadd.f32 %v217, %v782
  %784 = vmatmul.bf16.gmra.mxu0 %v669
  %v785 = vpop.f32.mrf.mxu0
  %v786 = vadd.f32 %v222, %v785
  %v787 = vpop.f32.mrf.mxu0
  %v788 = vadd.f32 %v227, %v787
  %789 = vmatmul.bf16.gmra.mxu0 %v672
  %v790 = vpop.f32.mrf.mxu0
  %v791 = vadd.f32 %v232, %v790
  %v792 = vpop.f32.mrf.mxu0
  %v793 = vadd.f32 %v237, %v792
  %794 = vmatmul.bf16.gmra.mxu0 %v675
  %v795 = vpop.f32.mrf.mxu0
  %v796 = vadd.f32 %v242, %v795
  %v797 = vpop.f32.mrf.mxu0
  %v798 = vadd.f32 %v247, %v797
  %799 = vmatmul.bf16.gmra.mxu0 %v678
  %v800 = vpop.f32.mrf.mxu0
  %v801 = vadd.f32 %v252, %v800
  %v802 = vpop.f32.mrf.mxu0
  %v803 = vadd.f32 %v257, %v802
  %804 = vmatmul.bf16.gmra.mxu0 %v681
  %v805 = vpop.f32.mrf.mxu0
  %v806 = vadd.f32 %v262, %v805
  %v807 = vpop.f32.mrf.mxu0
  %v808 = vadd.f32 %v267, %v807
  %809 = vmatmul.bf16.gmra.mxu0 %v684
  %v810 = vpop.f32.mrf.mxu0
  %v811 = vadd.f32 %v272, %v810
  %v812 = vpop.f32.mrf.mxu0
  %v813 = vadd.f32 %v277, %v812
  %814 = vmatmul.bf16.gmra.mxu0 %v687
  %v815 = vpop.f32.mrf.mxu0
  %v816 = vadd.f32 %v282, %v815
  %v817 = vpop.f32.mrf.mxu0
  %v818 = vadd.f32 %v287, %v817
  %819 = vmatmul.bf16.gmra.mxu0 %v690
  %v820 = vpop.f32.mrf.mxu0
  %v821 = vadd.f32 %v292, %v820
  %v822 = vpop.f32.mrf.mxu0
  %v823 = vadd.f32 %v297, %v822
  %824 = vmatmul.bf16.gmra.mxu0 %v693
  %v825 = vpop.f32.mrf.mxu0
  %v826 = vadd.f32 %v302, %v825
  %v827 = vpop.f32.mrf.mxu0
  %v828 = vadd.f32 %v307, %v827
  %829 = vmatmul.bf16.gmra.mxu0 %v696
  %v830 = vpop.f32.mrf.mxu0
  %v831 = vadd.f32 %v312, %v830
  %v832 = vpop.f32.mrf.mxu0
  %v833 = vadd.f32 %v317, %v832
  %834 = vmatmul.bf16.gmra.mxu0 %v699
  %v835 = vpop.f32.mrf.mxu0
  %v836 = vadd.f32 %v322, %v835
  %v837 = vpop.f32.mrf.mxu0
  %v838 = vadd.f32 %v327, %v837
  %839 = vmatmul.bf16.gmra.mxu0 %v702
  %v840 = vpop.f32.mrf.mxu0
  %v841 = vadd.f32 %v332, %v840
  %v842 = vpop.f32.mrf.mxu0
  %v843 = vadd.f32 %v337, %v842
  %844 = vmatmul.bf16.gmra.mxu0 %v705
  %v845 = vpop.f32.mrf.mxu0
  %v846 = vadd.f32 %v342, %v845
  %v847 = vpop.f32.mrf.mxu0
  %v848 = vadd.f32 %v347, %v847
  %849 = vmatmul.bf16.gmra.mxu0 %v708
  %v850 = vpop.f32.mrf.mxu0
  %v851 = vadd.f32 %v352, %v850
  %v852 = vpop.f32.mrf.mxu0
  %v853 = vadd.f32 %v357, %v852
  %854 = vmatmul.bf16.gmra.mxu0 %v711
  %v855 = vpop.f32.mrf.mxu0
  %v856 = vadd.f32 %v362, %v855
  %v857 = vpop.f32.mrf.mxu0
  %v858 = vadd.f32 %v367, %v857
  %859 = vmatmul.bf16.gmra.mxu0 %v714
  %v860 = vpop.f32.mrf.mxu0
  %v861 = vadd.f32 %v372, %v860
  %v862 = vpop.f32.mrf.mxu0
  %v863 = vadd.f32 %v377, %v862
  %864 = vmatmul.bf16.gmra.mxu0 %v717
  %v865 = vpop.f32.mrf.mxu0
  %v866 = vadd.f32 %v382, %v865
  %v867 = vpop.f32.mrf.mxu0
  %v868 = vadd.f32 %v387, %v867
  %869 = vmatmul.bf16.gmra.mxu0 %v720
  %v870 = vpop.f32.mrf.mxu0
  %v871 = vadd.f32 %v392, %v870
  %v872 = vpop.f32.mrf.mxu0
  %v873 = vadd.f32 %v397, %v872
  %874 = vmatmul.bf16.gmra.mxu0 %v723
  %v875 = vpop.f32.mrf.mxu0
  %v876 = vadd.f32 %v402, %v875
  %v877 = vpop.f32.mrf.mxu0
  %v878 = vadd.f32 %v407, %v877
  %879 = vmatmul.bf16.gmra.mxu0 %v726
  %v880 = vpop.f32.mrf.mxu0
  %v881 = vadd.f32 %v412, %v880
  %v882 = vpop.f32.mrf.mxu0
  %v883 = vadd.f32 %v417, %v882
  %884 = vmatmul.bf16.gmra.mxu0 %v729
  %v885 = vpop.f32.mrf.mxu0
  %v886 = vadd.f32 %v422, %v885
  %v887 = vpop.f32.mrf.mxu0
  %v888 = vadd.f32 %v427, %v887
  %889 = vmatmul.bf16.gmra.mxu0 %v732
  %v890 = vpop.f32.mrf.mxu0
  %v891 = vadd.f32 %v432, %v890
  %v892 = vpop.f32.mrf.mxu0
  %v893 = vadd.f32 %v437, %v892
  %894 = vmatmul.bf16.gmra.mxu0 %v735
  %v895 = vpop.f32.mrf.mxu0
  %v896 = vadd.f32 %v442, %v895
  %v897 = vpop.f32.mrf.mxu0
  %v898 = vadd.f32 %v447, %v897
  %899 = vmatmul.bf16.gmra.mxu0 %v738
  %v900 = vpop.f32.mrf.mxu0
  %v901 = vadd.f32 %v452, %v900
  %v902 = vpop.f32.mrf.mxu0
  %v903 = vadd.f32 %v457, %v902
  %904 = vmatmul.bf16.gmra.mxu0 %v741
  %v905 = vpop.f32.mrf.mxu0
  %v906 = vadd.f32 %v462, %v905
  %v907 = vpop.f32.mrf.mxu0
  %v908 = vadd.f32 %v467, %v907
  %909 = vmatmul.bf16.gmra.mxu0 %v744
  %v910 = vpop.f32.mrf.mxu0
  %v911 = vadd.f32 %v472, %v910
  %v912 = vpop.f32.mrf.mxu0
  %v913 = vadd.f32 %v477, %v912
  %914 = vdwg.mxu0
  %915 = vmatpush.bf16.msra.mxu0 0
  %916 = vmatpush.bf16.msra.mxu0 0
  %917 = vmatpush.bf16.msra.mxu0 0
  %918 = vmatpush.bf16.msra.mxu0 0
  %919 = vmatpush.bf16.msra.mxu0 0
  %920 = vmatpush.bf16.msra.mxu0 0
  %921 = vmatpush.bf16.msra.mxu0 0
  %922 = vmatpush.bf16.msra.mxu0 %v646
  %923 = vmatmul.bf16.gmra.mxu0 %v651
  %v924 = vpop.f32.mrf.mxu0
  %v925 = vadd.f32 %v162, %v924
  %v926 = vpop.f32.mrf.mxu0
  %v927 = vadd.f32 %v167, %v926
  %928 = vmatmul.bf16.gmra.mxu0 %v654
  %v929 = vpop.f32.mrf.mxu0
  %v930 = vadd.f32 %v172, %v929
  %v931 = vpop.f32.mrf.mxu0
  %v932 = vadd.f32 %v177, %v931
  %933 = vmatmul.bf16.gmra.mxu0 %v657
  %v934 = vpop.f32.mrf.mxu0
  %v935 = vadd.f32 %v182, %v934
  %v936 = vpop.f32.mrf.mxu0
  %v937 = vadd.f32 %v187, %v936
  %938 = vmatmul.bf16.gmra.mxu0 %v660
  %v939 = vpop.f32.mrf.mxu0
  %v940 = vadd.f32 %v192, %v939
  %v941 = vpop.f32.mrf.mxu0
  %v942 = vadd.f32 %v197, %v941
  %943 = vmatmul.bf16.gmra.mxu0 %v663
  %v944 = vpop.f32.mrf.mxu0
  %v945 = vadd.f32 %v202, %v944
  %v946 = vpop.f32.mrf.mxu0
  %v947 = vadd.f32 %v207, %v946
  %948 = vmatmul.bf16.gmra.mxu0 %v666
  %v949 = vpop.f32.mrf.mxu0
  %v950 = vadd.f32 %v212, %v949
  %v951 = vpop.f32.mrf.mxu0
  %v952 = vadd.f32 %v217, %v951
  %953 = vmatmul.bf16.gmra.mxu0 %v669
  %v954 = vpop.f32.mrf.mxu0
  %v955 = vadd.f32 %v222, %v954
  %v956 = vpop.f32.mrf.mxu0
  %v957 = vadd.f32 %v227, %v956
  %958 = vmatmul.bf16.gmra.mxu0 %v672
  %v959 = vpop.f32.mrf.mxu0
  %v960 = vadd.f32 %v232, %v959
  %v961 = vpop.f32.mrf.mxu0
  %v962 = vadd.f32 %v237, %v961
  %963 = vmatmul.bf16.gmra.mxu0 %v675
  %v964 = vpop.f32.mrf.mxu0
  %v965 = vadd.f32 %v242, %v964
  %v966 = vpop.f32.mrf.mxu0
  %v967 = vadd.f32 %v247, %v966
  %968 = vmatmul.bf16.gmra.mxu0 %v678
  %v969 = vpop.f32.mrf.mxu0
  %v970 = vadd.f32 %v252, %v969
  %v971 = vpop.f32.mrf.mxu0
  %v972 = vadd.f32 %v257, %v971
  %973 = vmatmul.bf16.gmra.mxu0 %v681
  %v974 = vpop.f32.mrf.mxu0
  %v975 = vadd.f32 %v262, %v974
  %v976 = vpop.f32.mrf.mxu0
  %v977 = vadd.f32 %v267, %v976
  %978 = vmatmul.bf16.gmra.mxu0 %v684
  %v979 = vpop.f32.mrf.mxu0
  %v980 = vadd.f32 %v272, %v979
  %v981 = vpop.f32.mrf.mxu0
  %v982 = vadd.f32 %v277, %v981
  %983 = vmatmul.bf16.gmra.mxu0 %v687
  %v984 = vpop.f32.mrf.mxu0
  %v985 = vadd.f32 %v282, %v984
  %v986 = vpop.f32.mrf.mxu0
  %v987 = vadd.f32 %v287, %v986
  %988 = vmatmul.bf16.gmra.mxu0 %v690
  %v989 = vpop.f32.mrf.mxu0
  %v990 = vadd.f32 %v292, %v989
  %v991 = vpop.f32.mrf.mxu0
  %v992 = vadd.f32 %v297, %v991
  %993 = vmatmul.bf16.gmra.mxu0 %v693
  %v994 = vpop.f32.mrf.mxu0
  %v995 = vadd.f32 %v302, %v994
  %v996 = vpop.f32.mrf.mxu0
  %v997 = vadd.f32 %v307, %v996
  %998 = vmatmul.bf16.gmra.mxu0 %v696
  %v999 = vpop.f32.mrf.mxu0
  %v1000 = vadd.f32 %v312, %v999
  %v1001 = vpop.f32.mrf.mxu0
  %v1002 = vadd.f32 %v317, %v1001
  %1003 = vmatmul.bf16.gmra.mxu0 %v699
  %v1004 = vpop.f32.mrf.mxu0
  %v1005 = vadd.f32 %v322, %v1004
  %v1006 = vpop.f32.mrf.mxu0
  %v1007 = vadd.f32 %v327, %v1006
  %1008 = vmatmul.bf16.gmra.mxu0 %v702
  %v1009 = vpop.f32.mrf.mxu0
  %v1010 = vadd.f32 %v332, %v1009
  %v1011 = vpop.f32.mrf.mxu0
  %v1012 = vadd.f32 %v337, %v1011
  %1013 = vmatmul.bf16.gmra.mxu0 %v705
  %v1014 = vpop.f32.mrf.mxu0
  %v1015 = vadd.f32 %v342, %v1014
  %v1016 = vpop.f32.mrf.mxu0
  %v1017 = vadd.f32 %v347, %v1016
  %1018 = vmatmul.bf16.gmra.mxu0 %v708
  %v1019 = vpop.f32.mrf.mxu0
  %v1020 = vadd.f32 %v352, %v1019
  %v1021 = vpop.f32.mrf.mxu0
  %v1022 = vadd.f32 %v357, %v1021
  %1023 = vmatmul.bf16.gmra.mxu0 %v711
  %v1024 = vpop.f32.mrf.mxu0
  %v1025 = vadd.f32 %v362, %v1024
  %v1026 = vpop.f32.mrf.mxu0
  %v1027 = vadd.f32 %v367, %v1026
  %1028 = vmatmul.bf16.gmra.mxu0 %v714
  %v1029 = vpop.f32.mrf.mxu0
  %v1030 = vadd.f32 %v372, %v1029
  %v1031 = vpop.f32.mrf.mxu0
  %v1032 = vadd.f32 %v377, %v1031
  %1033 = vmatmul.bf16.gmra.mxu0 %v717
  %v1034 = vpop.f32.mrf.mxu0
  %v1035 = vadd.f32 %v382, %v1034
  %v1036 = vpop.f32.mrf.mxu0
  %v1037 = vadd.f32 %v387, %v1036
  %1038 = vmatmul.bf16.gmra.mxu0 %v720
  %v1039 = vpop.f32.mrf.mxu0
  %v1040 = vadd.f32 %v392, %v1039
  %v1041 = vpop.f32.mrf.mxu0
  %v1042 = vadd.f32 %v397, %v1041
  %1043 = vmatmul.bf16.gmra.mxu0 %v723
  %v1044 = vpop.f32.mrf.mxu0
  %v1045 = vadd.f32 %v402, %v1044
  %v1046 = vpop.f32.mrf.mxu0
  %v1047 = vadd.f32 %v407, %v1046
  %1048 = vmatmul.bf16.gmra.mxu0 %v726
  %v1049 = vpop.f32.mrf.mxu0
  %v1050 = vadd.f32 %v412, %v1049
  %v1051 = vpop.f32.mrf.mxu0
  %v1052 = vadd.f32 %v417, %v1051
  %1053 = vmatmul.bf16.gmra.mxu0 %v729
  %v1054 = vpop.f32.mrf.mxu0
  %v1055 = vadd.f32 %v422, %v1054
  %v1056 = vpop.f32.mrf.mxu0
  %v1057 = vadd.f32 %v427, %v1056
  %1058 = vmatmul.bf16.gmra.mxu0 %v732
  %v1059 = vpop.f32.mrf.mxu0
  %v1060 = vadd.f32 %v432, %v1059
  %v1061 = vpop.f32.mrf.mxu0
  %v1062 = vadd.f32 %v437, %v1061
  %1063 = vmatmul.bf16.gmra.mxu0 %v735
  %v1064 = vpop.f32.mrf.mxu0
  %v1065 = vadd.f32 %v442, %v1064
  %v1066 = vpop.f32.mrf.mxu0
  %v1067 = vadd.f32 %v447, %v1066
  %1068 = vmatmul.bf16.gmra.mxu0 %v738
  %v1069 = vpop.f32.mrf.mxu0
  %v1070 = vadd.f32 %v452, %v1069
  %v1071 = vpop.f32.mrf.mxu0
  %v1072 = vadd.f32 %v457, %v1071
  %1073 = vmatmul.bf16.gmra.mxu0 %v741
  %v1074 = vpop.f32.mrf.mxu0
  %v1075 = vadd.f32 %v462, %v1074
  %v1076 = vpop.f32.mrf.mxu0
  %v1077 = vadd.f32 %v467, %v1076
  %1078 = vmatmul.bf16.gmra.mxu0 %v744
  %v1079 = vpop.f32.mrf.mxu0
  %v1080 = vadd.f32 %v472, %v1079
  %v1081 = vpop.f32.mrf.mxu0
  %v1082 = vadd.f32 %v477, %v1081
  %1083 = vdwg.mxu0
  %v1084 = vmax.f32 %v756, 0.0
  %v1085 = vmax.f32 %v925, 0.0
  %v1086 = vmax.f32 %v758, 0.0
  %v1087 = vmax.f32 %v927, 0.0
  %v1088 = vmax.f32 %v761, 0.0
  %v1089 = vmax.f32 %v930, 0.0
  %v1090 = vmax.f32 %v763, 0.0
  %v1091 = vmax.f32 %v932, 0.0
  %v1092 = vmax.f32 %v766, 0.0
  %v1093 = vmax.f32 %v935, 0.0
  %v1094 = vmax.f32 %v768, 0.0
  %v1095 = vmax.f32 %v937, 0.0
  %v1096 = vmax.f32 %v771, 0.0
  %v1097 = vmax.f32 %v940, 0.0
  %v1098 = vmax.f32 %v773, 0.0
  %v1099 = vmax.f32 %v942, 0.0
  %v1100 = vmax.f32 %v776, 0.0
  %v1101 = vmax.f32 %v945, 0.0
  %v1102 = vmax.f32 %v778, 0.0
  %v1103 = vmax.f32 %v947, 0.0
  %v1104 = vmax.f32 %v781, 0.0
  %v1105 = vmax.f32 %v950, 0.0
  %v1106 = vmax.f32 %v783, 0.0
  %v1107 = vmax.f32 %v952, 0.0
  %v1108 = vmax.f32 %v786, 0.0
  %v1109 = vmax.f32 %v955, 0.0
  %v1110 = vmax.f32 %v788, 0.0
  %v1111 = vmax.f32 %v957, 0.0
  %v1112 = vmax.f32 %v791, 0.0
  %v1113 = vmax.f32 %v960, 0.0
  %v1114 = vmax.f32 %v793, 0.0
  %v1115 = vmax.f32 %v962, 0.0
  %v1116 = vmax.f32 %v796, 0.0
  %v1117 = vmax.f32 %v965, 0.0
  %v1118 = vmax.f32 %v798, 0.0
  %v1119 = vmax.f32 %v967, 0.0
  %v1120 = vmax.f32 %v801, 0.0
  %v1121 = vmax.f32 %v970, 0.0
  %v1122 = vmax.f32 %v803, 0.0
  %v1123 = vmax.f32 %v972, 0.0
  %v1124 = vmax.f32 %v806, 0.0
  %v1125 = vmax.f32 %v975, 0.0
  %v1126 = vmax.f32 %v808, 0.0
  %v1127 = vmax.f32 %v977, 0.0
  %v1128 = vmax.f32 %v811, 0.0
  %v1129 = vmax.f32 %v980, 0.0
  %v1130 = vmax.f32 %v813, 0.0
  %v1131 = vmax.f32 %v982, 0.0
  %v1132 = vmax.f32 %v816, 0.0
  %v1133 = vmax.f32 %v985, 0.0
  %v1134 = vmax.f32 %v818, 0.0
  %v1135 = vmax.f32 %v987, 0.0
  %v1136 = vmax.f32 %v821, 0.0
  %v1137 = vmax.f32 %v990, 0.0
  %v1138 = vmax.f32 %v823, 0.0
  %v1139 = vmax.f32 %v992, 0.0
  %v1140 = vmax.f32 %v826, 0.0
  %v1141 = vmax.f32 %v995, 0.0
  %v1142 = vmax.f32 %v828, 0.0
  %v1143 = vmax.f32 %v997, 0.0
  %v1144 = vmax.f32 %v831, 0.0
  %v1145 = vmax.f32 %v1000, 0.0
  %v1146 = vmax.f32 %v833, 0.0
  %v1147 = vmax.f32 %v1002, 0.0
  %v1148 = vmax.f32 %v836, 0.0
  %v1149 = vmax.f32 %v1005, 0.0
  %v1150 = vmax.f32 %v838, 0.0
  %v1151 = vmax.f32 %v1007, 0.0
  %v1152 = vmax.f32 %v841, 0.0
  %v1153 = vmax.f32 %v1010, 0.0
  %v1154 = vmax.f32 %v843, 0.0
  %v1155 = vmax.f32 %v1012, 0.0
  %v1156 = vmax.f32 %v846, 0.0
  %v1157 = vmax.f32 %v1015, 0.0
  %v1158 = vmax.f32 %v848, 0.0
  %v1159 = vmax.f32 %v1017, 0.0
  %v1160 = vmax.f32 %v851, 0.0
  %v1161 = vmax.f32 %v1020, 0.0
  %v1162 = vmax.f32 %v853, 0.0
  %v1163 = vmax.f32 %v1022, 0.0
  %v1164 = vmax.f32 %v856, 0.0
  %v1165 = vmax.f32 %v1025, 0.0
  %v1166 = vmax.f32 %v858, 0.0
  %v1167 = vmax.f32 %v1027, 0.0
  %v1168 = vmax.f32 %v861, 0.0
  %v1169 = vmax.f32 %v1030, 0.0
  %v1170 = vmax.f32 %v863, 0.0
  %v1171 = vmax.f32 %v1032, 0.0
  %v1172 = vmax.f32 %v866, 0.0
  %v1173 = vmax.f32 %v1035, 0.0
  %v1174 = vmax.f32 %v868, 0.0
  %v1175 = vmax.f32 %v1037, 0.0
  %v1176 = vmax.f32 %v871, 0.0
  %v1177 = vmax.f32 %v1040, 0.0
  %v1178 = vmax.f32 %v873, 0.0
  %v1179 = vmax.f32 %v1042, 0.0
  %v1180 = vmax.f32 %v876, 0.0
  %v1181 = vmax.f32 %v1045, 0.0
  %v1182 = vmax.f32 %v878, 0.0
  %v1183 = vmax.f32 %v1047, 0.0
  %v1184 = vmax.f32 %v881, 0.0
  %v1185 = vmax.f32 %v1050, 0.0
  %v1186 = vmax.f32 %v883, 0.0
  %v1187 = vmax.f32 %v1052, 0.0
  %v1188 = vmax.f32 %v886, 0.0
  %v1189 = vmax.f32 %v1055, 0.0
  %v1190 = vmax.f32 %v888, 0.0
  %v1191 = vmax.f32 %v1057, 0.0
  %v1192 = vmax.f32 %v891, 0.0
  %v1193 = vmax.f32 %v1060, 0.0
  %v1194 = vmax.f32 %v893, 0.0
  %v1195 = vmax.f32 %v1062, 0.0
  %v1196 = vmax.f32 %v896, 0.0
  %v1197 = vmax.f32 %v1065, 0.0
  %v1198 = vmax.f32 %v898, 0.0
  %v1199 = vmax.f32 %v1067, 0.0
  %v1200 = vmax.f32 %v901, 0.0
  %v1201 = vmax.f32 %v1070, 0.0
  %v1202 = vmax.f32 %v903, 0.0
  %v1203 = vmax.f32 %v1072, 0.0
  %v1204 = vmax.f32 %v906, 0.0
  %v1205 = vmax.f32 %v1075, 0.0
  %v1206 = vmax.f32 %v908, 0.0
  %v1207 = vmax.f32 %v1077, 0.0
  %v1208 = vmax.f32 %v911, 0.0
  %v1209 = vmax.f32 %v1080, 0.0
  %v1210 = vmax.f32 %v913, 0.0
  %v1211 = vmax.f32 %v1082, 0.0
  %v1212 = vld [vmem:[%s3] sm:$0xff]
  %v1213 = vld [vmem:[%s3 + $0x8] sm:$0xff]
  %v1214 = vld [vmem:[%s3 + $0x10] sm:$0xff]
  %v1215 = vld [vmem:[%s3 + $0x18] sm:$0xff]
  %v1216 = vld [vmem:[%s3 + $0x20] sm:$0xff]
  %v1217 = vld [vmem:[%s3 + $0x28] sm:$0xff]
  %v1218 = vld [vmem:[%s3 + $0x30] sm:$0xff]
  %v1219 = vld [vmem:[%s3 + $0x38] sm:$0xff]
  %v1220 = vld [vmem:[%s3 + $0x40] sm:$0xff]
  %v1221 = vld [vmem:[%s3 + $0x48] sm:$0xff]
  %v1222 = vld [vmem:[%s3 + $0x50] sm:$0xff]
  %v1223 = vld [vmem:[%s3 + $0x58] sm:$0xff]
  %v1224 = vld [vmem:[%s3 + $0x60] sm:$0xff]
  %v1225 = vld [vmem:[%s3 + $0x68] sm:$0xff]
  %v1226 = vld [vmem:[%s3 + $0x70] sm:$0xff]
  %v1227 = vld [vmem:[%s3 + $0x78] sm:$0xff]
  %v1228 = vld [vmem:[%s3 + $0x80] sm:$0xff]
  %v1229 = vld [vmem:[%s3 + $0x88] sm:$0xff]
  %v1230 = vld [vmem:[%s3 + $0x90] sm:$0xff]
  %v1231 = vld [vmem:[%s3 + $0x98] sm:$0xff]
  %v1232 = vld [vmem:[%s3 + $0xa0] sm:$0xff]
  %v1233 = vld [vmem:[%s3 + $0xa8] sm:$0xff]
  %v1234 = vld [vmem:[%s3 + $0xb0] sm:$0xff]
  %v1235 = vld [vmem:[%s3 + $0xb8] sm:$0xff]
  %v1236 = vld [vmem:[%s3 + $0xc0] sm:$0xff]
  %v1237 = vld [vmem:[%s3 + $0xc8] sm:$0xff]
  %v1238 = vld [vmem:[%s3 + $0xd0] sm:$0xff]
  %v1239 = vld [vmem:[%s3 + $0xd8] sm:$0xff]
  %v1240 = vld [vmem:[%s3 + $0xe0] sm:$0xff]
  %v1241 = vld [vmem:[%s3 + $0xe8] sm:$0xff]
  %v1242 = vld [vmem:[%s3 + $0xf0] sm:$0xff]
  %v1243 = vld [vmem:[%s3 + $0xf8] sm:$0xff]
  %v1244 = vld [vmem:[%s3 + $0x100] sm:$0xff]
  %v1245 = vld [vmem:[%s3 + $0x108] sm:$0xff]
  %v1246 = vld [vmem:[%s3 + $0x110] sm:$0xff]
  %v1247 = vld [vmem:[%s3 + $0x118] sm:$0xff]
  %v1248 = vld [vmem:[%s3 + $0x120] sm:$0xff]
  %v1249 = vld [vmem:[%s3 + $0x128] sm:$0xff]
  %v1250 = vld [vmem:[%s3 + $0x130] sm:$0xff]
  %v1251 = vld [vmem:[%s3 + $0x138] sm:$0xff]
  %v1252 = vld [vmem:[%s3 + $0x140] sm:$0xff]
  %v1253 = vld [vmem:[%s3 + $0x148] sm:$0xff]
  %v1254 = vld [vmem:[%s3 + $0x150] sm:$0xff]
  %v1255 = vld [vmem:[%s3 + $0x158] sm:$0xff]
  %v1256 = vld [vmem:[%s3 + $0x160] sm:$0xff]
  %v1257 = vld [vmem:[%s3 + $0x168] sm:$0xff]
  %v1258 = vld [vmem:[%s3 + $0x170] sm:$0xff]
  %v1259 = vld [vmem:[%s3 + $0x178] sm:$0xff]
  %v1260 = vld [vmem:[%s3 + $0x180] sm:$0xff]
  %v1261 = vld [vmem:[%s3 + $0x188] sm:$0xff]
  %v1262 = vld [vmem:[%s3 + $0x190] sm:$0xff]
  %v1263 = vld [vmem:[%s3 + $0x198] sm:$0xff]
  %v1264 = vld [vmem:[%s3 + $0x1a0] sm:$0xff]
  %v1265 = vld [vmem:[%s3 + $0x1a8] sm:$0xff]
  %v1266 = vld [vmem:[%s3 + $0x1b0] sm:$0xff]
  %v1267 = vld [vmem:[%s3 + $0x1b8] sm:$0xff]
  %v1268 = vld [vmem:[%s3 + $0x1c0] sm:$0xff]
  %v1269 = vld [vmem:[%s3 + $0x1c8] sm:$0xff]
  %v1270 = vld [vmem:[%s3 + $0x1d0] sm:$0xff]
  %v1271 = vld [vmem:[%s3 + $0x1d8] sm:$0xff]
  %v1272 = vld [vmem:[%s3 + $0x1e0] sm:$0xff]
  %v1273 = vld [vmem:[%s3 + $0x1e8] sm:$0xff]
  %v1274 = vld [vmem:[%s3 + $0x1f0] sm:$0xff]
  %v1275 = vld [vmem:[%s3 + $0x1f8] sm:$0xff]
  %v1276 = vld [vmem:[%s3 + $0x200] sm:$0xff]
  %v1277 = vld [vmem:[%s3 + $0x208] sm:$0xff]
  %v1278 = vld [vmem:[%s3 + $0x210] sm:$0xff]
  %v1279 = vld [vmem:[%s3 + $0x218] sm:$0xff]
  %v1280 = vld [vmem:[%s3 + $0x220] sm:$0xff]
  %v1281 = vld [vmem:[%s3 + $0x228] sm:$0xff]
  %v1282 = vld [vmem:[%s3 + $0x230] sm:$0xff]
  %v1283 = vld [vmem:[%s3 + $0x238] sm:$0xff]
  %v1284 = vld [vmem:[%s3 + $0x240] sm:$0xff]
  %v1285 = vld [vmem:[%s3 + $0x248] sm:$0xff]
  %v1286 = vld [vmem:[%s3 + $0x250] sm:$0xff]
  %v1287 = vld [vmem:[%s3 + $0x258] sm:$0xff]
  %v1288 = vld [vmem:[%s3 + $0x260] sm:$0xff]
  %v1289 = vld [vmem:[%s3 + $0x268] sm:$0xff]
  %v1290 = vld [vmem:[%s3 + $0x270] sm:$0xff]
  %v1291 = vld [vmem:[%s3 + $0x278] sm:$0xff]
  %v1292 = vld [vmem:[%s3 + $0x280] sm:$0xff]
  %v1293 = vld [vmem:[%s3 + $0x288] sm:$0xff]
  %v1294 = vld [vmem:[%s3 + $0x290] sm:$0xff]
  %v1295 = vld [vmem:[%s3 + $0x298] sm:$0xff]
  %v1296 = vld [vmem:[%s3 + $0x2a0] sm:$0xff]
  %v1297 = vld [vmem:[%s3 + $0x2a8] sm:$0xff]
  %v1298 = vld [vmem:[%s3 + $0x2b0] sm:$0xff]
  %v1299 = vld [vmem:[%s3 + $0x2b8] sm:$0xff]
  %v1300 = vld [vmem:[%s3 + $0x2c0] sm:$0xff]
  %v1301 = vld [vmem:[%s3 + $0x2c8] sm:$0xff]
  %v1302 = vld [vmem:[%s3 + $0x2d0] sm:$0xff]
  %v1303 = vld [vmem:[%s3 + $0x2d8] sm:$0xff]
  %v1304 = vld [vmem:[%s3 + $0x2e0] sm:$0xff]
  %v1305 = vld [vmem:[%s3 + $0x2e8] sm:$0xff]
  %v1306 = vld [vmem:[%s3 + $0x2f0] sm:$0xff]
  %v1307 = vld [vmem:[%s3 + $0x2f8] sm:$0xff]
  %v1308 = vpack.c.bf16 %v1086, %v1084
  %v1309 = vpack.c.bf16 %v1087, %v1085
  %v1310 = vpack.c.bf16 %v1090, %v1088
  %v1311 = vpack.c.bf16 %v1091, %v1089
  %v1312 = vpack.c.bf16 %v1094, %v1092
  %v1313 = vpack.c.bf16 %v1095, %v1093
  %v1314 = vpack.c.bf16 %v1098, %v1096
  %v1315 = vpack.c.bf16 %v1099, %v1097
  %v1316 = vpack.c.bf16 %v1102, %v1100
  %v1317 = vpack.c.bf16 %v1103, %v1101
  %v1318 = vpack.c.bf16 %v1106, %v1104
  %v1319 = vpack.c.bf16 %v1107, %v1105
  %v1320 = vpack.c.bf16 %v1110, %v1108
  %v1321 = vpack.c.bf16 %v1111, %v1109
  %v1322 = vpack.c.bf16 %v1114, %v1112
  %v1323 = vpack.c.bf16 %v1115, %v1113
  %v1324 = vpack.c.bf16 %v1118, %v1116
  %v1325 = vpack.c.bf16 %v1119, %v1117
  %v1326 = vpack.c.bf16 %v1122, %v1120
  %v1327 = vpack.c.bf16 %v1123, %v1121
  %v1328 = vpack.c.bf16 %v1126, %v1124
  %v1329 = vpack.c.bf16 %v1127, %v1125
  %v1330 = vpack.c.bf16 %v1130, %v1128
  %v1331 = vpack.c.bf16 %v1131, %v1129
  %v1332 = vpack.c.bf16 %v1134, %v1132
  %v1333 = vpack.c.bf16 %v1135, %v1133
  %v1334 = vpack.c.bf16 %v1138, %v1136
  %v1335 = vpack.c.bf16 %v1139, %v1137
  %v1336 = vpack.c.bf16 %v1142, %v1140
  %v1337 = vpack.c.bf16 %v1143, %v1141
  %v1338 = vpack.c.bf16 %v1146, %v1144
  %v1339 = vpack.c.bf16 %v1147, %v1145
  %v1340 = vpack.c.bf16 %v1150, %v1148
  %v1341 = vpack.c.bf16 %v1151, %v1149
  %v1342 = vpack.c.bf16 %v1154, %v1152
  %v1343 = vpack.c.bf16 %v1155, %v1153
  %v1344 = vpack.c.bf16 %v1158, %v1156
  %v1345 = vpack.c.bf16 %v1159, %v1157
  %v1346 = vpack.c.bf16 %v1162, %v1160
  %v1347 = vpack.c.bf16 %v1163, %v1161
  %v1348 = vpack.c.bf16 %v1166, %v1164
  %v1349 = vpack.c.bf16 %v1167, %v1165
  %v1350 = vpack.c.bf16 %v1170, %v1168
  %v1351 = vpack.c.bf16 %v1171, %v1169
  %v1352 = vpack.c.bf16 %v1174, %v1172
  %v1353 = vpack.c.bf16 %v1175, %v1173
  %v1354 = vpack.c.bf16 %v1178, %v1176
  %v1355 = vpack.c.bf16 %v1179, %v1177
  %v1356 = vpack.c.bf16 %v1182, %v1180
  %v1357 = vpack.c.bf16 %v1183, %v1181
  %v1358 = vpack.c.bf16 %v1186, %v1184
  %v1359 = vpack.c.bf16 %v1187, %v1185
  %v1360 = vpack.c.bf16 %v1190, %v1188
  %v1361 = vpack.c.bf16 %v1191, %v1189
  %v1362 = vpack.c.bf16 %v1194, %v1192
  %v1363 = vpack.c.bf16 %v1195, %v1193
  %v1364 = vpack.c.bf16 %v1198, %v1196
  %v1365 = vpack.c.bf16 %v1199, %v1197
  %v1366 = vpack.c.bf16 %v1202, %v1200
  %v1367 = vpack.c.bf16 %v1203, %v1201
  %v1368 = vpack.c.bf16 %v1206, %v1204
  %v1369 = vpack.c.bf16 %v1207, %v1205
  %v1370 = vpack.c.bf16 %v1210, %v1208
  %v1371 = vpack.c.bf16 %v1211, %v1209
  %v1372 = vld [vmem:[%s4] sm:$0xff]
  %v1373 = vld [vmem:[%s4 + $0x8] sm:$0xff]
  %v1374 = vld [vmem:[%s4 + $0x10] sm:$0xff]
  %v1375 = vld [vmem:[%s4 + $0x18] sm:$0xff]
  %v1376 = vld [vmem:[%s4 + $0x20] sm:$0xff]
  %v1377 = vld [vmem:[%s4 + $0x28] sm:$0xff]
  %v1378 = vld [vmem:[%s4 + $0x30] sm:$0xff]
  %v1379 = vld [vmem:[%s4 + $0x38] sm:$0xff]
  %v1380 = vld [vmem:[%s4 + $0x40] sm:$0xff]
  %v1381 = vld [vmem:[%s4 + $0x48] sm:$0xff]
  %v1382 = vld [vmem:[%s4 + $0x50] sm:$0xff]
  %v1383 = vld [vmem:[%s4 + $0x58] sm:$0xff]
  %v1384 = vld [vmem:[%s4 + $0x60] sm:$0xff]
  %v1385 = vld [vmem:[%s4 + $0x68] sm:$0xff]
  %v1386 = vld [vmem:[%s4 + $0x70] sm:$0xff]
  %v1387 = vld [vmem:[%s4 + $0x78] sm:$0xff]
  %v1388 = vld [vmem:[%s4 + $0x80] sm:$0xff]
  %v1389 = vld [vmem:[%s4 + $0x88] sm:$0xff]
  %v1390 = vld [vmem:[%s4 + $0x90] sm:$0xff]
  %v1391 = vld [vmem:[%s4 + $0x98] sm:$0xff]
  %v1392 = vld [vmem:[%s4 + $0xa0] sm:$0xff]
  %v1393 = vld [vmem:[%s4 + $0xa8] sm:$0xff]
  %v1394 = vld [vmem:[%s4 + $0xb0] sm:$0xff]
  %v1395 = vld [vmem:[%s4 + $0xb8] sm:$0xff]
  %v1396 = vld [vmem:[%s4 + $0xc0] sm:$0xff]
  %v1397 = vld [vmem:[%s4 + $0xc8] sm:$0xff]
  %v1398 = vld [vmem:[%s4 + $0xd0] sm:$0xff]
  %v1399 = vld [vmem:[%s4 + $0xd8] sm:$0xff]
  %v1400 = vld [vmem:[%s4 + $0xe0] sm:$0xff]
  %v1401 = vld [vmem:[%s4 + $0xe8] sm:$0xff]
  %v1402 = vld [vmem:[%s4 + $0xf0] sm:$0xff]
  %v1403 = vld [vmem:[%s4 + $0xf8] sm:$0xff]
  %v1404 = vld [vmem:[%s4 + $0x100] sm:$0xff]
  %v1405 = vld [vmem:[%s4 + $0x108] sm:$0xff]
  %v1406 = vld [vmem:[%s4 + $0x110] sm:$0xff]
  %v1407 = vld [vmem:[%s4 + $0x118] sm:$0xff]
  %v1408 = vld [vmem:[%s4 + $0x120] sm:$0xff]
  %v1409 = vld [vmem:[%s4 + $0x128] sm:$0xff]
  %v1410 = vld [vmem:[%s4 + $0x130] sm:$0xff]
  %v1411 = vld [vmem:[%s4 + $0x138] sm:$0xff]
  %v1412 = vld [vmem:[%s4 + $0x140] sm:$0xff]
  %v1413 = vld [vmem:[%s4 + $0x148] sm:$0xff]
  %v1414 = vld [vmem:[%s4 + $0x150] sm:$0xff]
  %v1415 = vld [vmem:[%s4 + $0x158] sm:$0xff]
  %v1416 = vld [vmem:[%s4 + $0x160] sm:$0xff]
  %v1417 = vld [vmem:[%s4 + $0x168] sm:$0xff]
  %v1418 = vld [vmem:[%s4 + $0x170] sm:$0xff]
  %v1419 = vld [vmem:[%s4 + $0x178] sm:$0xff]
  %1421 = vset.pattern.permute.xlu0 0
  %1422 = vperm.xlu0 %1421, %v1372
  %v1423 = vpop.permute.xlu0 %1422
  %1426 = vset.pattern.permute.xlu0 0
  %1427 = vperm.xlu0 %1426, %v1373
  %v1428 = vpop.permute.xlu0 %1427
  %1431 = vset.pattern.permute.xlu0 0
  %1432 = vperm.xlu0 %1431, %v1374
  %v1433 = vpop.permute.xlu0 %1432
  %1436 = vset.pattern.permute.xlu0 0
  %1437 = vperm.xlu0 %1436, %v1375
  %v1438 = vpop.permute.xlu0 %1437
  %1441 = vset.pattern.permute.xlu0 0
  %1442 = vperm.xlu0 %1441, %v1376
  %v1443 = vpop.permute.xlu0 %1442
  %1446 = vset.pattern.permute.xlu0 0
  %1447 = vperm.xlu0 %1446, %v1377
  %v1448 = vpop.permute.xlu0 %1447
  %1451 = vset.pattern.permute.xlu0 0
  %1452 = vperm.xlu0 %1451, %v1378
  %v1453 = vpop.permute.xlu0 %1452
  %1456 = vset.pattern.permute.xlu0 0
  %1457 = vperm.xlu0 %1456, %v1379
  %v1458 = vpop.permute.xlu0 %1457
  %1461 = vset.pattern.permute.xlu0 0
  %1462 = vperm.xlu0 %1461, %v1380
  %v1463 = vpop.permute.xlu0 %1462
  %1466 = vset.pattern.permute.xlu0 0
  %1467 = vperm.xlu0 %1466, %v1381
  %v1468 = vpop.permute.xlu0 %1467
  %1471 = vset.pattern.permute.xlu0 0
  %1472 = vperm.xlu0 %1471, %v1382
  %v1473 = vpop.permute.xlu0 %1472
  %1476 = vset.pattern.permute.xlu0 0
  %1477 = vperm.xlu0 %1476, %v1383
  %v1478 = vpop.permute.xlu0 %1477
  %1481 = vset.pattern.permute.xlu0 0
  %1482 = vperm.xlu0 %1481, %v1384
  %v1483 = vpop.permute.xlu0 %1482
  %1486 = vset.pattern.permute.xlu0 0
  %1487 = vperm.xlu0 %1486, %v1385
  %v1488 = vpop.permute.xlu0 %1487
  %1491 = vset.pattern.permute.xlu0 0
  %1492 = vperm.xlu0 %1491, %v1386
  %v1493 = vpop.permute.xlu0 %1492
  %1496 = vset.pattern.permute.xlu0 0
  %1497 = vperm.xlu0 %1496, %v1387
  %v1498 = vpop.permute.xlu0 %1497
  %1501 = vset.pattern.permute.xlu0 0
  %1502 = vperm.xlu0 %1501, %v1388
  %v1503 = vpop.permute.xlu0 %1502
  %1506 = vset.pattern.permute.xlu0 0
  %1507 = vperm.xlu0 %1506, %v1389
  %v1508 = vpop.permute.xlu0 %1507
  %1511 = vset.pattern.permute.xlu0 0
  %1512 = vperm.xlu0 %1511, %v1390
  %v1513 = vpop.permute.xlu0 %1512
  %1516 = vset.pattern.permute.xlu0 0
  %1517 = vperm.xlu0 %1516, %v1391
  %v1518 = vpop.permute.xlu0 %1517
  %1521 = vset.pattern.permute.xlu0 0
  %1522 = vperm.xlu0 %1521, %v1392
  %v1523 = vpop.permute.xlu0 %1522
  %1526 = vset.pattern.permute.xlu0 0
  %1527 = vperm.xlu0 %1526, %v1393
  %v1528 = vpop.permute.xlu0 %1527
  %1531 = vset.pattern.permute.xlu0 0
  %1532 = vperm.xlu0 %1531, %v1394
  %v1533 = vpop.permute.xlu0 %1532
  %1536 = vset.pattern.permute.xlu0 0
  %1537 = vperm.xlu0 %1536, %v1395
  %v1538 = vpop.permute.xlu0 %1537
  %1541 = vset.pattern.permute.xlu0 0
  %1542 = vperm.xlu0 %1541, %v1396
  %v1543 = vpop.permute.xlu0 %1542
  %1546 = vset.pattern.permute.xlu0 0
  %1547 = vperm.xlu0 %1546, %v1397
  %v1548 = vpop.permute.xlu0 %1547
  %1551 = vset.pattern.permute.xlu0 0
  %1552 = vperm.xlu0 %1551, %v1398
  %v1553 = vpop.permute.xlu0 %1552
  %1556 = vset.pattern.permute.xlu0 0
  %1557 = vperm.xlu0 %1556, %v1399
  %v1558 = vpop.permute.xlu0 %1557
  %1561 = vset.pattern.permute.xlu0 0
  %1562 = vperm.xlu0 %1561, %v1400
  %v1563 = vpop.permute.xlu0 %1562
  %1566 = vset.pattern.permute.xlu0 0
  %1567 = vperm.xlu0 %1566, %v1401
  %v1568 = vpop.permute.xlu0 %1567
  %1571 = vset.pattern.permute.xlu0 0
  %1572 = vperm.xlu0 %1571, %v1402
  %v1573 = vpop.permute.xlu0 %1572
  %1576 = vset.pattern.permute.xlu0 0
  %1577 = vperm.xlu0 %1576, %v1403
  %v1578 = vpop.permute.xlu0 %1577
  %1581 = vset.pattern.permute.xlu0 0
  %1582 = vperm.xlu0 %1581, %v1404
  %v1583 = vpop.permute.xlu0 %1582
  %1586 = vset.pattern.permute.xlu0 0
  %1587 = vperm.xlu0 %1586, %v1405
  %v1588 = vpop.permute.xlu0 %1587
  %1591 = vset.pattern.permute.xlu0 0
  %1592 = vperm.xlu0 %1591, %v1406
  %v1593 = vpop.permute.xlu0 %1592
  %1596 = vset.pattern.permute.xlu0 0
  %1597 = vperm.xlu0 %1596, %v1407
  %v1598 = vpop.permute.xlu0 %1597
  %1601 = vset.pattern.permute.xlu0 0
  %1602 = vperm.xlu0 %1601, %v1408
  %v1603 = vpop.permute.xlu0 %1602
  %1606 = vset.pattern.permute.xlu0 0
  %1607 = vperm.xlu0 %1606, %v1409
  %v1608 = vpop.permute.xlu0 %1607
  %1611 = vset.pattern.permute.xlu0 0
  %1612 = vperm.xlu0 %1611, %v1410
  %v1613 = vpop.permute.xlu0 %1612
  %1616 = vset.pattern.permute.xlu0 0
  %1617 = vperm.xlu0 %1616, %v1411
  %v1618 = vpop.permute.xlu0 %1617
  %1621 = vset.pattern.permute.xlu0 0
  %1622 = vperm.xlu0 %1621, %v1412
  %v1623 = vpop.permute.xlu0 %1622
  %1626 = vset.pattern.permute.xlu0 0
  %1627 = vperm.xlu0 %1626, %v1413
  %v1628 = vpop.permute.xlu0 %1627
  %1631 = vset.pattern.permute.xlu0 0
  %1632 = vperm.xlu0 %1631, %v1414
  %v1633 = vpop.permute.xlu0 %1632
  %1636 = vset.pattern.permute.xlu0 0
  %1637 = vperm.xlu0 %1636, %v1415
  %v1638 = vpop.permute.xlu0 %1637
  %1641 = vset.pattern.permute.xlu0 0
  %1642 = vperm.xlu0 %1641, %v1416
  %v1643 = vpop.permute.xlu0 %1642
  %1646 = vset.pattern.permute.xlu0 0
  %1647 = vperm.xlu0 %1646, %v1417
  %v1648 = vpop.permute.xlu0 %1647
  %1651 = vset.pattern.permute.xlu0 0
  %1652 = vperm.xlu0 %1651, %v1418
  %v1653 = vpop.permute.xlu0 %1652
  %1656 = vset.pattern.permute.xlu0 0
  %1657 = vperm.xlu0 %1656, %v1419
  %v1658 = vpop.permute.xlu0 %1657
  %v1756 = vunpack.c.l.b16 %v1212
  %v1757 = vunpack.c.h.b16 %v1212
  %v1758 = vunpack.c.l.b16 %v1213
  %v1759 = vunpack.c.h.b16 %v1213
  %v1760 = vunpack.c.l.b16 %v1214
  %v1761 = vunpack.c.h.b16 %v1214
  %v1762 = vunpack.c.l.b16 %v1215
  %v1763 = vunpack.c.h.b16 %v1215
  %v1764 = vunpack.c.l.b16 %v1216
  %v1765 = vunpack.c.h.b16 %v1216
  %v1766 = vunpack.c.l.b16 %v1217
  %v1767 = vunpack.c.h.b16 %v1217
  %v1768 = vunpack.c.l.b16 %v1218
  %v1769 = vunpack.c.h.b16 %v1218
  %v1770 = vunpack.c.l.b16 %v1219
  %v1771 = vunpack.c.h.b16 %v1219
  %v1772 = vunpack.c.l.b16 %v1220
  %v1773 = vunpack.c.h.b16 %v1220
  %v1774 = vunpack.c.l.b16 %v1221
  %v1775 = vunpack.c.h.b16 %v1221
  %v1776 = vunpack.c.l.b16 %v1222
  %v1777 = vunpack.c.h.b16 %v1222
  %v1778 = vunpack.c.l.b16 %v1223
  %v1779 = vunpack.c.h.b16 %v1223
  %v1780 = vunpack.c.l.b16 %v1224
  %v1781 = vunpack.c.h.b16 %v1224
  %v1782 = vunpack.c.l.b16 %v1225
  %v1783 = vunpack.c.h.b16 %v1225
  %v1784 = vunpack.c.l.b16 %v1226
  %v1785 = vunpack.c.h.b16 %v1226
  %v1786 = vunpack.c.l.b16 %v1227
  %v1787 = vunpack.c.h.b16 %v1227
  %v1788 = vunpack.c.l.b16 %v1228
  %v1789 = vunpack.c.h.b16 %v1228
  %v1790 = vunpack.c.l.b16 %v1229
  %v1791 = vunpack.c.h.b16 %v1229
  %v1792 = vunpack.c.l.b16 %v1230
  %v1793 = vunpack.c.h.b16 %v1230
  %v1794 = vunpack.c.l.b16 %v1231
  %v1795 = vunpack.c.h.b16 %v1231
  %v1796 = vunpack.c.l.b16 %v1232
  %v1797 = vunpack.c.h.b16 %v1232
  %v1798 = vunpack.c.l.b16 %v1233
  %v1799 = vunpack.c.h.b16 %v1233
  %v1800 = vunpack.c.l.b16 %v1234
  %v1801 = vunpack.c.h.b16 %v1234
  %v1802 = vunpack.c.l.b16 %v1235
  %v1803 = vunpack.c.h.b16 %v1235
  %v1804 = vunpack.c.l.b16 %v1236
  %v1805 = vunpack.c.h.b16 %v1236
  %v1806 = vunpack.c.l.b16 %v1237
  %v1807 = vunpack.c.h.b16 %v1237
  %v1808 = vunpack.c.l.b16 %v1238
  %v1809 = vunpack.c.h.b16 %v1238
  %v1810 = vunpack.c.l.b16 %v1239
  %v1811 = vunpack.c.h.b16 %v1239
  %v1812 = vunpack.c.l.b16 %v1240
  %v1813 = vunpack.c.h.b16 %v1240
  %v1814 = vunpack.c.l.b16 %v1241
  %v1815 = vunpack.c.h.b16 %v1241
  %v1816 = vunpack.c.l.b16 %v1242
  %v1817 = vunpack.c.h.b16 %v1242
  %v1818 = vunpack.c.l.b16 %v1243
  %v1819 = vunpack.c.h.b16 %v1243
  %v1820 = vunpack.c.l.b16 %v1244
  %v1821 = vunpack.c.h.b16 %v1244
  %v1822 = vunpack.c.l.b16 %v1245
  %v1823 = vunpack.c.h.b16 %v1245
  %v1824 = vunpack.c.l.b16 %v1246
  %v1825 = vunpack.c.h.b16 %v1246
  %v1826 = vunpack.c.l.b16 %v1247
  %v1827 = vunpack.c.h.b16 %v1247
  %v1828 = vunpack.c.l.b16 %v1248
  %v1829 = vunpack.c.h.b16 %v1248
  %v1830 = vunpack.c.l.b16 %v1249
  %v1831 = vunpack.c.h.b16 %v1249
  %v1832 = vunpack.c.l.b16 %v1250
  %v1833 = vunpack.c.h.b16 %v1250
  %v1834 = vunpack.c.l.b16 %v1251
  %v1835 = vunpack.c.h.b16 %v1251
  %v1836 = vunpack.c.l.b16 %v1252
  %v1837 = vunpack.c.h.b16 %v1252
  %v1838 = vunpack.c.l.b16 %v1253
  %v1839 = vunpack.c.h.b16 %v1253
  %v1840 = vunpack.c.l.b16 %v1254
  %v1841 = vunpack.c.h.b16 %v1254
  %v1842 = vunpack.c.l.b16 %v1255
  %v1843 = vunpack.c.h.b16 %v1255
  %v1844 = vunpack.c.l.b16 %v1256
  %v1845 = vunpack.c.h.b16 %v1256
  %v1846 = vunpack.c.l.b16 %v1257
  %v1847 = vunpack.c.h.b16 %v1257
  %v1848 = vunpack.c.l.b16 %v1258
  %v1849 = vunpack.c.h.b16 %v1258
  %v1850 = vunpack.c.l.b16 %v1259
  %v1851 = vunpack.c.h.b16 %v1259
  %v1852 = vunpack.c.l.b16 %v1260
  %v1853 = vunpack.c.h.b16 %v1260
  %v1854 = vunpack.c.l.b16 %v1261
  %v1855 = vunpack.c.h.b16 %v1261
  %v1856 = vunpack.c.l.b16 %v1262
  %v1857 = vunpack.c.h.b16 %v1262
  %v1858 = vunpack.c.l.b16 %v1263
  %v1859 = vunpack.c.h.b16 %v1263
  %v1860 = vunpack.c.l.b16 %v1264
  %v1861 = vunpack.c.h.b16 %v1264
  %v1862 = vunpack.c.l.b16 %v1265
  %v1863 = vunpack.c.h.b16 %v1265
  %v1864 = vunpack.c.l.b16 %v1266
  %v1865 = vunpack.c.h.b16 %v1266
  %v1866 = vunpack.c.l.b16 %v1267
  %v1867 = vunpack.c.h.b16 %v1267
  %v1868 = vunpack.c.l.b16 %v1268
  %v1869 = vunpack.c.h.b16 %v1268
  %v1870 = vunpack.c.l.b16 %v1269
  %v1871 = vunpack.c.h.b16 %v1269
  %v1872 = vunpack.c.l.b16 %v1270
  %v1873 = vunpack.c.h.b16 %v1270
  %v1874 = vunpack.c.l.b16 %v1271
  %v1875 = vunpack.c.h.b16 %v1271
  %v1876 = vunpack.c.l.b16 %v1272
  %v1877 = vunpack.c.h.b16 %v1272
  %v1878 = vunpack.c.l.b16 %v1273
  %v1879 = vunpack.c.h.b16 %v1273
  %v1880 = vunpack.c.l.b16 %v1274
  %v1881 = vunpack.c.h.b16 %v1274
  %v1882 = vunpack.c.l.b16 %v1275
  %v1883 = vunpack.c.h.b16 %v1275
  %v1884 = vunpack.c.l.b16 %v1276
  %v1885 = vunpack.c.h.b16 %v1276
  %v1886 = vunpack.c.l.b16 %v1277
  %v1887 = vunpack.c.h.b16 %v1277
  %v1888 = vunpack.c.l.b16 %v1278
  %v1889 = vunpack.c.h.b16 %v1278
  %v1890 = vunpack.c.l.b16 %v1279
  %v1891 = vunpack.c.h.b16 %v1279
  %v1892 = vunpack.c.l.b16 %v1280
  %v1893 = vunpack.c.h.b16 %v1280
  %v1894 = vunpack.c.l.b16 %v1281
  %v1895 = vunpack.c.h.b16 %v1281
  %v1896 = vunpack.c.l.b16 %v1282
  %v1897 = vunpack.c.h.b16 %v1282
  %v1898 = vunpack.c.l.b16 %v1283
  %v1899 = vunpack.c.h.b16 %v1283
  %v1900 = vunpack.c.l.b16 %v1284
  %v1901 = vunpack.c.h.b16 %v1284
  %v1902 = vunpack.c.l.b16 %v1285
  %v1903 = vunpack.c.h.b16 %v1285
  %v1904 = vunpack.c.l.b16 %v1286
  %v1905 = vunpack.c.h.b16 %v1286
  %v1906 = vunpack.c.l.b16 %v1287
  %v1907 = vunpack.c.h.b16 %v1287
  %v1908 = vunpack.c.l.b16 %v1288
  %v1909 = vunpack.c.h.b16 %v1288
  %v1910 = vunpack.c.l.b16 %v1289
  %v1911 = vunpack.c.h.b16 %v1289
  %v1912 = vunpack.c.l.b16 %v1290
  %v1913 = vunpack.c.h.b16 %v1290
  %v1914 = vunpack.c.l.b16 %v1291
  %v1915 = vunpack.c.h.b16 %v1291
  %v1916 = vunpack.c.l.b16 %v1292
  %v1917 = vunpack.c.h.b16 %v1292
  %v1918 = vunpack.c.l.b16 %v1293
  %v1919 = vunpack.c.h.b16 %v1293
  %v1920 = vunpack.c.l.b16 %v1294
  %v1921 = vunpack.c.h.b16 %v1294
  %v1922 = vunpack.c.l.b16 %v1295
  %v1923 = vunpack.c.h.b16 %v1295
  %v1924 = vunpack.c.l.b16 %v1296
  %v1925 = vunpack.c.h.b16 %v1296
  %v1926 = vunpack.c.l.b16 %v1297
  %v1927 = vunpack.c.h.b16 %v1297
  %v1928 = vunpack.c.l.b16 %v1298
  %v1929 = vunpack.c.h.b16 %v1298
  %v1930 = vunpack.c.l.b16 %v1299
  %v1931 = vunpack.c.h.b16 %v1299
  %v1932 = vunpack.c.l.b16 %v1300
  %v1933 = vunpack.c.h.b16 %v1300
  %v1934 = vunpack.c.l.b16 %v1301
  %v1935 = vunpack.c.h.b16 %v1301
  %v1936 = vunpack.c.l.b16 %v1302
  %v1937 = vunpack.c.h.b16 %v1302
  %v1938 = vunpack.c.l.b16 %v1303
  %v1939 = vunpack.c.h.b16 %v1303
  %v1940 = vunpack.c.l.b16 %v1304
  %v1941 = vunpack.c.h.b16 %v1304
  %v1942 = vunpack.c.l.b16 %v1305
  %v1943 = vunpack.c.h.b16 %v1305
  %v1944 = vunpack.c.l.b16 %v1306
  %v1945 = vunpack.c.h.b16 %v1306
  %v1946 = vunpack.c.l.b16 %v1307
  %v1947 = vunpack.c.h.b16 %v1307
  %v1948 = vpack.c.b16 %v1760, %v1756
  %v1949 = vpack.c.b16 %v1761, %v1757
  %v1950 = vpack.c.b16 %v1762, %v1758
  %v1951 = vpack.c.b16 %v1763, %v1759
  %v1952 = vpack.c.b16 %v1768, %v1764
  %v1953 = vpack.c.b16 %v1769, %v1765
  %v1954 = vpack.c.b16 %v1770, %v1766
  %v1955 = vpack.c.b16 %v1771, %v1767
  %v1956 = vpack.c.b16 %v1776, %v1772
  %v1957 = vpack.c.b16 %v1777, %v1773
  %v1958 = vpack.c.b16 %v1778, %v1774
  %v1959 = vpack.c.b16 %v1779, %v1775
  %v1960 = vpack.c.b16 %v1784, %v1780
  %v1961 = vpack.c.b16 %v1785, %v1781
  %v1962 = vpack.c.b16 %v1786, %v1782
  %v1963 = vpack.c.b16 %v1787, %v1783
  %v1964 = vpack.c.b16 %v1792, %v1788
  %v1965 = vpack.c.b16 %v1793, %v1789
  %v1966 = vpack.c.b16 %v1794, %v1790
  %v1967 = vpack.c.b16 %v1795, %v1791
  %v1968 = vpack.c.b16 %v1800, %v1796
  %v1969 = vpack.c.b16 %v1801, %v1797
  %v1970 = vpack.c.b16 %v1802, %v1798
  %v1971 = vpack.c.b16 %v1803, %v1799
  %v1972 = vpack.c.b16 %v1808, %v1804
  %v1973 = vpack.c.b16 %v1809, %v1805
  %v1974 = vpack.c.b16 %v1810, %v1806
  %v1975 = vpack.c.b16 %v1811, %v1807
  %v1976 = vpack.c.b16 %v1816, %v1812
  %v1977 = vpack.c.b16 %v1817, %v1813
  %v1978 = vpack.c.b16 %v1818, %v1814
  %v1979 = vpack.c.b16 %v1819, %v1815
  %v1980 = vpack.c.b16 %v1824, %v1820
  %v1981 = vpack.c.b16 %v1825, %v1821
  %v1982 = vpack.c.b16 %v1826, %v1822
  %v1983 = vpack.c.b16 %v1827, %v1823
  %v1984 = vpack.c.b16 %v1832, %v1828
  %v1985 = vpack.c.b16 %v1833, %v1829
  %v1986 = vpack.c.b16 %v1834, %v1830
  %v1987 = vpack.c.b16 %v1835, %v1831
  %v1988 = vpack.c.b16 %v1840, %v1836
  %v1989 = vpack.c.b16 %v1841, %v1837
  %v1990 = vpack.c.b16 %v1842, %v1838
  %v1991 = vpack.c.b16 %v1843, %v1839
  %v1992 = vpack.c.b16 %v1848, %v1844
  %v1993 = vpack.c.b16 %v1849, %v1845
  %v1994 = vpack.c.b16 %v1850, %v1846
  %v1995 = vpack.c.b16 %v1851, %v1847
  %v1996 = vpack.c.b16 %v1856, %v1852
  %v1997 = vpack.c.b16 %v1857, %v1853
  %v1998 = vpack.c.b16 %v1858, %v1854
  %v1999 = vpack.c.b16 %v1859, %v1855
  %v2000 = vpack.c.b16 %v1864, %v1860
  %v2001 = vpack.c.b16 %v1865, %v1861
  %v2002 = vpack.c.b16 %v1866, %v1862
  %v2003 = vpack.c.b16 %v1867, %v1863
  %v2004 = vpack.c.b16 %v1872, %v1868
  %v2005 = vpack.c.b16 %v1873, %v1869
  %v2006 = vpack.c.b16 %v1874, %v1870
  %v2007 = vpack.c.b16 %v1875, %v1871
  %v2008 = vpack.c.b16 %v1880, %v1876
  %v2009 = vpack.c.b16 %v1881, %v1877
  %v2010 = vpack.c.b16 %v1882, %v1878
  %v2011 = vpack.c.b16 %v1883, %v1879
  %v2012 = vpack.c.b16 %v1888, %v1884
  %v2013 = vpack.c.b16 %v1889, %v1885
  %v2014 = vpack.c.b16 %v1890, %v1886
  %v2015 = vpack.c.b16 %v1891, %v1887
  %v2016 = vpack.c.b16 %v1896, %v1892
  %v2017 = vpack.c.b16 %v1897, %v1893
  %v2018 = vpack.c.b16 %v1898, %v1894
  %v2019 = vpack.c.b16 %v1899, %v1895
  %v2020 = vpack.c.b16 %v1904, %v1900
  %v2021 = vpack.c.b16 %v1905, %v1901
  %v2022 = vpack.c.b16 %v1906, %v1902
  %v2023 = vpack.c.b16 %v1907, %v1903
  %v2024 = vpack.c.b16 %v1912, %v1908
  %v2025 = vpack.c.b16 %v1913, %v1909
  %v2026 = vpack.c.b16 %v1914, %v1910
  %v2027 = vpack.c.b16 %v1915, %v1911
  %v2028 = vpack.c.b16 %v1920, %v1916
  %v2029 = vpack.c.b16 %v1921, %v1917
  %v2030 = vpack.c.b16 %v1922, %v1918
  %v2031 = vpack.c.b16 %v1923, %v1919
  %v2032 = vpack.c.b16 %v1928, %v1924
  %v2033 = vpack.c.b16 %v1929, %v1925
  %v2034 = vpack.c.b16 %v1930, %v1926
  %v2035 = vpack.c.b16 %v1931, %v1927
  %v2036 = vpack.c.b16 %v1936, %v1932
  %v2037 = vpack.c.b16 %v1937, %v1933
  %v2038 = vpack.c.b16 %v1938, %v1934
  %v2039 = vpack.c.b16 %v1939, %v1935
  %v2040 = vpack.c.b16 %v1944, %v1940
  %v2041 = vpack.c.b16 %v1945, %v1941
  %v2042 = vpack.c.b16 %v1946, %v1942
  %v2043 = vpack.c.b16 %v1947, %v1943
  %2140 = vmatpush.bf16.msra.mxu0 %v1322
  %2141 = vmatpush.bf16.msra.mxu0 %v1320
  %2142 = vmatpush.bf16.msra.mxu0 %v1318
  %2143 = vmatpush.bf16.msra.mxu0 %v1316
  %2144 = vmatpush.bf16.msra.mxu0 %v1314
  %2145 = vmatpush.bf16.msra.mxu0 %v1312
  %2146 = vmatpush.bf16.msra.mxu0 %v1310
  %2147 = vmatpush.bf16.msra.mxu0 %v1308
  %2148 = vmatmul.bf16.gmra.mxu0 %v1948
  %v2149 = vpop.f32.mrf.mxu0
  %v2150 = vadd.f32 %v1423, %v2149
  %v2151 = vpop.f32.mrf.mxu0
  %v2152 = vadd.f32 %v1428, %v2151
  %2153 = vmatmul.bf16.gmra.mxu0 %v1952
  %v2154 = vpop.f32.mrf.mxu0
  %v2155 = vadd.f32 %v1433, %v2154
  %v2156 = vpop.f32.mrf.mxu0
  %v2157 = vadd.f32 %v1438, %v2156
  %2158 = vmatmul.bf16.gmra.mxu0 %v1956
  %v2159 = vpop.f32.mrf.mxu0
  %v2160 = vadd.f32 %v1443, %v2159
  %v2161 = vpop.f32.mrf.mxu0
  %v2162 = vadd.f32 %v1448, %v2161
  %2163 = vmatmul.bf16.gmra.mxu0 %v1960
  %v2164 = vpop.f32.mrf.mxu0
  %v2165 = vadd.f32 %v1453, %v2164
  %v2166 = vpop.f32.mrf.mxu0
  %v2167 = vadd.f32 %v1458, %v2166
  %2168 = vmatmul.bf16.gmra.mxu0 %v1964
  %v2169 = vpop.f32.mrf.mxu0
  %v2170 = vadd.f32 %v1463, %v2169
  %v2171 = vpop.f32.mrf.mxu0
  %v2172 = vadd.f32 %v1468, %v2171
  %2173 = vmatmul.bf16.gmra.mxu0 %v1968
  %v2174 = vpop.f32.mrf.mxu0
  %v2175 = vadd.f32 %v1473, %v2174
  %v2176 = vpop.f32.mrf.mxu0
  %v2177 = vadd.f32 %v1478, %v2176
  %2178 = vmatmul.bf16.gmra.mxu0 %v1972
  %v2179 = vpop.f32.mrf.mxu0
  %v2180 = vadd.f32 %v1483, %v2179
  %v2181 = vpop.f32.mrf.mxu0
  %v2182 = vadd.f32 %v1488, %v2181
  %2183 = vmatmul.bf16.gmra.mxu0 %v1976
  %v2184 = vpop.f32.mrf.mxu0
  %v2185 = vadd.f32 %v1493, %v2184
  %v2186 = vpop.f32.mrf.mxu0
  %v2187 = vadd.f32 %v1498, %v2186
  %2188 = vmatmul.bf16.gmra.mxu0 %v1980
  %v2189 = vpop.f32.mrf.mxu0
  %v2190 = vadd.f32 %v1503, %v2189
  %v2191 = vpop.f32.mrf.mxu0
  %v2192 = vadd.f32 %v1508, %v2191
  %2193 = vmatmul.bf16.gmra.mxu0 %v1984
  %v2194 = vpop.f32.mrf.mxu0
  %v2195 = vadd.f32 %v1513, %v2194
  %v2196 = vpop.f32.mrf.mxu0
  %v2197 = vadd.f32 %v1518, %v2196
  %2198 = vmatmul.bf16.gmra.mxu0 %v1988
  %v2199 = vpop.f32.mrf.mxu0
  %v2200 = vadd.f32 %v1523, %v2199
  %v2201 = vpop.f32.mrf.mxu0
  %v2202 = vadd.f32 %v1528, %v2201
  %2203 = vmatmul.bf16.gmra.mxu0 %v1992
  %v2204 = vpop.f32.mrf.mxu0
  %v2205 = vadd.f32 %v1533, %v2204
  %v2206 = vpop.f32.mrf.mxu0
  %v2207 = vadd.f32 %v1538, %v2206
  %2208 = vmatmul.bf16.gmra.mxu0 %v1996
  %v2209 = vpop.f32.mrf.mxu0
  %v2210 = vadd.f32 %v1543, %v2209
  %v2211 = vpop.f32.mrf.mxu0
  %v2212 = vadd.f32 %v1548, %v2211
  %2213 = vmatmul.bf16.gmra.mxu0 %v2000
  %v2214 = vpop.f32.mrf.mxu0
  %v2215 = vadd.f32 %v1553, %v2214
  %v2216 = vpop.f32.mrf.mxu0
  %v2217 = vadd.f32 %v1558, %v2216
  %2218 = vmatmul.bf16.gmra.mxu0 %v2004
  %v2219 = vpop.f32.mrf.mxu0
  %v2220 = vadd.f32 %v1563, %v2219
  %v2221 = vpop.f32.mrf.mxu0
  %v2222 = vadd.f32 %v1568, %v2221
  %2223 = vmatmul.bf16.gmra.mxu0 %v2008
  %v2224 = vpop.f32.mrf.mxu0
  %v2225 = vadd.f32 %v1573, %v2224
  %v2226 = vpop.f32.mrf.mxu0
  %v2227 = vadd.f32 %v1578, %v2226
  %2228 = vmatmul.bf16.gmra.mxu0 %v2012
  %v2229 = vpop.f32.mrf.mxu0
  %v2230 = vadd.f32 %v1583, %v2229
  %v2231 = vpop.f32.mrf.mxu0
  %v2232 = vadd.f32 %v1588, %v2231
  %2233 = vmatmul.bf16.gmra.mxu0 %v2016
  %v2234 = vpop.f32.mrf.mxu0
  %v2235 = vadd.f32 %v1593, %v2234
  %v2236 = vpop.f32.mrf.mxu0
  %v2237 = vadd.f32 %v1598, %v2236
  %2238 = vmatmul.bf16.gmra.mxu0 %v2020
  %v2239 = vpop.f32.mrf.mxu0
  %v2240 = vadd.f32 %v1603, %v2239
  %v2241 = vpop.f32.mrf.mxu0
  %v2242 = vadd.f32 %v1608, %v2241
  %2243 = vmatmul.bf16.gmra.mxu0 %v2024
  %v2244 = vpop.f32.mrf.mxu0
  %v2245 = vadd.f32 %v1613, %v2244
  %v2246 = vpop.f32.mrf.mxu0
  %v2247 = vadd.f32 %v1618, %v2246
  %2248 = vmatmul.bf16.gmra.mxu0 %v2028
  %v2249 = vpop.f32.mrf.mxu0
  %v2250 = vadd.f32 %v1623, %v2249
  %v2251 = vpop.f32.mrf.mxu0
  %v2252 = vadd.f32 %v1628, %v2251
  %2253 = vmatmul.bf16.gmra.mxu0 %v2032
  %v2254 = vpop.f32.mrf.mxu0
  %v2255 = vadd.f32 %v1633, %v2254
  %v2256 = vpop.f32.mrf.mxu0
  %v2257 = vadd.f32 %v1638, %v2256
  %2258 = vmatmul.bf16.gmra.mxu0 %v2036
  %v2259 = vpop.f32.mrf.mxu0
  %v2260 = vadd.f32 %v1643, %v2259
  %v2261 = vpop.f32.mrf.mxu0
  %v2262 = vadd.f32 %v1648, %v2261
  %2263 = vmatmul.bf16.gmra.mxu0 %v2040
  %v2264 = vpop.f32.mrf.mxu0
  %v2265 = vadd.f32 %v1653, %v2264
  %v2266 = vpop.f32.mrf.mxu0
  %v2267 = vadd.f32 %v1658, %v2266
  %2268 = vdwg.mxu0
  %2269 = vmatpush.bf16.msra.mxu0 %v1338
  %2270 = vmatpush.bf16.msra.mxu0 %v1336
  %2271 = vmatpush.bf16.msra.mxu0 %v1334
  %2272 = vmatpush.bf16.msra.mxu0 %v1332
  %2273 = vmatpush.bf16.msra.mxu0 %v1330
  %2274 = vmatpush.bf16.msra.mxu0 %v1328
  %2275 = vmatpush.bf16.msra.mxu0 %v1326
  %2276 = vmatpush.bf16.msra.mxu0 %v1324
  %2277 = vmatmul.bf16.gmra.mxu0 %v1949
  %v2278 = vpop.f32.mrf.mxu0
  %v2279 = vadd.f32 %v2150, %v2278
  %v2280 = vpop.f32.mrf.mxu0
  %v2281 = vadd.f32 %v2152, %v2280
  %2282 = vmatmul.bf16.gmra.mxu0 %v1953
  %v2283 = vpop.f32.mrf.mxu0
  %v2284 = vadd.f32 %v2155, %v2283
  %v2285 = vpop.f32.mrf.mxu0
  %v2286 = vadd.f32 %v2157, %v2285
  %2287 = vmatmul.bf16.gmra.mxu0 %v1957
  %v2288 = vpop.f32.mrf.mxu0
  %v2289 = vadd.f32 %v2160, %v2288
  %v2290 = vpop.f32.mrf.mxu0
  %v2291 = vadd.f32 %v2162, %v2290
  %2292 = vmatmul.bf16.gmra.mxu0 %v1961
  %v2293 = vpop.f32.mrf.mxu0
  %v2294 = vadd.f32 %v2165, %v2293
  %v2295 = vpop.f32.mrf.mxu0
  %v2296 = vadd.f32 %v2167, %v2295
  %2297 = vmatmul.bf16.gmra.mxu0 %v1965
  %v2298 = vpop.f32.mrf.mxu0
  %v2299 = vadd.f32 %v2170, %v2298
  %v2300 = vpop.f32.mrf.mxu0
  %v2301 = vadd.f32 %v2172, %v2300
  %2302 = vmatmul.bf16.gmra.mxu0 %v1969
  %v2303 = vpop.f32.mrf.mxu0
  %v2304 = vadd.f32 %v2175, %v2303
  %v2305 = vpop.f32.mrf.mxu0
  %v2306 = vadd.f32 %v2177, %v2305
  %2307 = vmatmul.bf16.gmra.mxu0 %v1973
  %v2308 = vpop.f32.mrf.mxu0
  %v2309 = vadd.f32 %v2180, %v2308
  %v2310 = vpop.f32.mrf.mxu0
  %v2311 = vadd.f32 %v2182, %v2310
  %2312 = vmatmul.bf16.gmra.mxu0 %v1977
  %v2313 = vpop.f32.mrf.mxu0
  %v2314 = vadd.f32 %v2185, %v2313
  %v2315 = vpop.f32.mrf.mxu0
  %v2316 = vadd.f32 %v2187, %v2315
  %2317 = vmatmul.bf16.gmra.mxu0 %v1981
  %v2318 = vpop.f32.mrf.mxu0
  %v2319 = vadd.f32 %v2190, %v2318
  %v2320 = vpop.f32.mrf.mxu0
  %v2321 = vadd.f32 %v2192, %v2320
  %2322 = vmatmul.bf16.gmra.mxu0 %v1985
  %v2323 = vpop.f32.mrf.mxu0
  %v2324 = vadd.f32 %v2195, %v2323
  %v2325 = vpop.f32.mrf.mxu0
  %v2326 = vadd.f32 %v2197, %v2325
  %2327 = vmatmul.bf16.gmra.mxu0 %v1989
  %v2328 = vpop.f32.mrf.mxu0
  %v2329 = vadd.f32 %v2200, %v2328
  %v2330 = vpop.f32.mrf.mxu0
  %v2331 = vadd.f32 %v2202, %v2330
  %2332 = vmatmul.bf16.gmra.mxu0 %v1993
  %v2333 = vpop.f32.mrf.mxu0
  %v2334 = vadd.f32 %v2205, %v2333
  %v2335 = vpop.f32.mrf.mxu0
  %v2336 = vadd.f32 %v2207, %v2335
  %2337 = vmatmul.bf16.gmra.mxu0 %v1997
  %v2338 = vpop.f32.mrf.mxu0
  %v2339 = vadd.f32 %v2210, %v2338
  %v2340 = vpop.f32.mrf.mxu0
  %v2341 = vadd.f32 %v2212, %v2340
  %2342 = vmatmul.bf16.gmra.mxu0 %v2001
  %v2343 = vpop.f32.mrf.mxu0
  %v2344 = vadd.f32 %v2215, %v2343
  %v2345 = vpop.f32.mrf.mxu0
  %v2346 = vadd.f32 %v2217, %v2345
  %2347 = vmatmul.bf16.gmra.mxu0 %v2005
  %v2348 = vpop.f32.mrf.mxu0
  %v2349 = vadd.f32 %v2220, %v2348
  %v2350 = vpop.f32.mrf.mxu0
  %v2351 = vadd.f32 %v2222, %v2350
  %2352 = vmatmul.bf16.gmra.mxu0 %v2009
  %v2353 = vpop.f32.mrf.mxu0
  %v2354 = vadd.f32 %v2225, %v2353
  %v2355 = vpop.f32.mrf.mxu0
  %v2356 = vadd.f32 %v2227, %v2355
  %2357 = vmatmul.bf16.gmra.mxu0 %v2013
  %v2358 = vpop.f32.mrf.mxu0
  %v2359 = vadd.f32 %v2230, %v2358
  %v2360 = vpop.f32.mrf.mxu0
  %v2361 = vadd.f32 %v2232, %v2360
  %2362 = vmatmul.bf16.gmra.mxu0 %v2017
  %v2363 = vpop.f32.mrf.mxu0
  %v2364 = vadd.f32 %v2235, %v2363
  %v2365 = vpop.f32.mrf.mxu0
  %v2366 = vadd.f32 %v2237, %v2365
  %2367 = vmatmul.bf16.gmra.mxu0 %v2021
  %v2368 = vpop.f32.mrf.mxu0
  %v2369 = vadd.f32 %v2240, %v2368
  %v2370 = vpop.f32.mrf.mxu0
  %v2371 = vadd.f32 %v2242, %v2370
  %2372 = vmatmul.bf16.gmra.mxu0 %v2025
  %v2373 = vpop.f32.mrf.mxu0
  %v2374 = vadd.f32 %v2245, %v2373
  %v2375 = vpop.f32.mrf.mxu0
  %v2376 = vadd.f32 %v2247, %v2375
  %2377 = vmatmul.bf16.gmra.mxu0 %v2029
  %v2378 = vpop.f32.mrf.mxu0
  %v2379 = vadd.f32 %v2250, %v2378
  %v2380 = vpop.f32.mrf.mxu0
  %v2381 = vadd.f32 %v2252, %v2380
  %2382 = vmatmul.bf16.gmra.mxu0 %v2033
  %v2383 = vpop.f32.mrf.mxu0
  %v2384 = vadd.f32 %v2255, %v2383
  %v2385 = vpop.f32.mrf.mxu0
  %v2386 = vadd.f32 %v2257, %v2385
  %2387 = vmatmul.bf16.gmra.mxu0 %v2037
  %v2388 = vpop.f32.mrf.mxu0
  %v2389 = vadd.f32 %v2260, %v2388
  %v2390 = vpop.f32.mrf.mxu0
  %v2391 = vadd.f32 %v2262, %v2390
  %2392 = vmatmul.bf16.gmra.mxu0 %v2041
  %v2393 = vpop.f32.mrf.mxu0
  %v2394 = vadd.f32 %v2265, %v2393
  %v2395 = vpop.f32.mrf.mxu0
  %v2396 = vadd.f32 %v2267, %v2395
  %2397 = vdwg.mxu0
  %2398 = vmatpush.bf16.msra.mxu0 %v1354
  %2399 = vmatpush.bf16.msra.mxu0 %v1352
  %2400 = vmatpush.bf16.msra.mxu0 %v1350
  %2401 = vmatpush.bf16.msra.mxu0 %v1348
  %2402 = vmatpush.bf16.msra.mxu0 %v1346
  %2403 = vmatpush.bf16.msra.mxu0 %v1344
  %2404 = vmatpush.bf16.msra.mxu0 %v1342
  %2405 = vmatpush.bf16.msra.mxu0 %v1340
  %2406 = vmatmul.bf16.gmra.mxu0 %v1950
  %v2407 = vpop.f32.mrf.mxu0
  %v2408 = vadd.f32 %v2279, %v2407
  %v2409 = vpop.f32.mrf.mxu0
  %v2410 = vadd.f32 %v2281, %v2409
  %2411 = vmatmul.bf16.gmra.mxu0 %v1954
  %v2412 = vpop.f32.mrf.mxu0
  %v2413 = vadd.f32 %v2284, %v2412
  %v2414 = vpop.f32.mrf.mxu0
  %v2415 = vadd.f32 %v2286, %v2414
  %2416 = vmatmul.bf16.gmra.mxu0 %v1958
  %v2417 = vpop.f32.mrf.mxu0
  %v2418 = vadd.f32 %v2289, %v2417
  %v2419 = vpop.f32.mrf.mxu0
  %v2420 = vadd.f32 %v2291, %v2419
  %2421 = vmatmul.bf16.gmra.mxu0 %v1962
  %v2422 = vpop.f32.mrf.mxu0
  %v2423 = vadd.f32 %v2294, %v2422
  %v2424 = vpop.f32.mrf.mxu0
  %v2425 = vadd.f32 %v2296, %v2424
  %2426 = vmatmul.bf16.gmra.mxu0 %v1966
  %v2427 = vpop.f32.mrf.mxu0
  %v2428 = vadd.f32 %v2299, %v2427
  %v2429 = vpop.f32.mrf.mxu0
  %v2430 = vadd.f32 %v2301, %v2429
  %2431 = vmatmul.bf16.gmra.mxu0 %v1970
  %v2432 = vpop.f32.mrf.mxu0
  %v2433 = vadd.f32 %v2304, %v2432
  %v2434 = vpop.f32.mrf.mxu0
  %v2435 = vadd.f32 %v2306, %v2434
  %2436 = vmatmul.bf16.gmra.mxu0 %v1974
  %v2437 = vpop.f32.mrf.mxu0
  %v2438 = vadd.f32 %v2309, %v2437
  %v2439 = vpop.f32.mrf.mxu0
  %v2440 = vadd.f32 %v2311, %v2439
  %2441 = vmatmul.bf16.gmra.mxu0 %v1978
  %v2442 = vpop.f32.mrf.mxu0
  %v2443 = vadd.f32 %v2314, %v2442
  %v2444 = vpop.f32.mrf.mxu0
  %v2445 = vadd.f32 %v2316, %v2444
  %2446 = vmatmul.bf16.gmra.mxu0 %v1982
  %v2447 = vpop.f32.mrf.mxu0
  %v2448 = vadd.f32 %v2319, %v2447
  %v2449 = vpop.f32.mrf.mxu0
  %v2450 = vadd.f32 %v2321, %v2449
  %2451 = vmatmul.bf16.gmra.mxu0 %v1986
  %v2452 = vpop.f32.mrf.mxu0
  %v2453 = vadd.f32 %v2324, %v2452
  %v2454 = vpop.f32.mrf.mxu0
  %v2455 = vadd.f32 %v2326, %v2454
  %2456 = vmatmul.bf16.gmra.mxu0 %v1990
  %v2457 = vpop.f32.mrf.mxu0
  %v2458 = vadd.f32 %v2329, %v2457
  %v2459 = vpop.f32.mrf.mxu0
  %v2460 = vadd.f32 %v2331, %v2459
  %2461 = vmatmul.bf16.gmra.mxu0 %v1994
  %v2462 = vpop.f32.mrf.mxu0
  %v2463 = vadd.f32 %v2334, %v2462
  %v2464 = vpop.f32.mrf.mxu0
  %v2465 = vadd.f32 %v2336, %v2464
  %2466 = vmatmul.bf16.gmra.mxu0 %v1998
  %v2467 = vpop.f32.mrf.mxu0
  %v2468 = vadd.f32 %v2339, %v2467
  %v2469 = vpop.f32.mrf.mxu0
  %v2470 = vadd.f32 %v2341, %v2469
  %2471 = vmatmul.bf16.gmra.mxu0 %v2002
  %v2472 = vpop.f32.mrf.mxu0
  %v2473 = vadd.f32 %v2344, %v2472
  %v2474 = vpop.f32.mrf.mxu0
  %v2475 = vadd.f32 %v2346, %v2474
  %2476 = vmatmul.bf16.gmra.mxu0 %v2006
  %v2477 = vpop.f32.mrf.mxu0
  %v2478 = vadd.f32 %v2349, %v2477
  %v2479 = vpop.f32.mrf.mxu0
  %v2480 = vadd.f32 %v2351, %v2479
  %2481 = vmatmul.bf16.gmra.mxu0 %v2010
  %v2482 = vpop.f32.mrf.mxu0
  %v2483 = vadd.f32 %v2354, %v2482
  %v2484 = vpop.f32.mrf.mxu0
  %v2485 = vadd.f32 %v2356, %v2484
  %2486 = vmatmul.bf16.gmra.mxu0 %v2014
  %v2487 = vpop.f32.mrf.mxu0
  %v2488 = vadd.f32 %v2359, %v2487
  %v2489 = vpop.f32.mrf.mxu0
  %v2490 = vadd.f32 %v2361, %v2489
  %2491 = vmatmul.bf16.gmra.mxu0 %v2018
  %v2492 = vpop.f32.mrf.mxu0
  %v2493 = vadd.f32 %v2364, %v2492
  %v2494 = vpop.f32.mrf.mxu0
  %v2495 = vadd.f32 %v2366, %v2494
  %2496 = vmatmul.bf16.gmra.mxu0 %v2022
  %v2497 = vpop.f32.mrf.mxu0
  %v2498 = vadd.f32 %v2369, %v2497
  %v2499 = vpop.f32.mrf.mxu0
  %v2500 = vadd.f32 %v2371, %v2499
  %2501 = vmatmul.bf16.gmra.mxu0 %v2026
  %v2502 = vpop.f32.mrf.mxu0
  %v2503 = vadd.f32 %v2374, %v2502
  %v2504 = vpop.f32.mrf.mxu0
  %v2505 = vadd.f32 %v2376, %v2504
  %2506 = vmatmul.bf16.gmra.mxu0 %v2030
  %v2507 = vpop.f32.mrf.mxu0
  %v2508 = vadd.f32 %v2379, %v2507
  %v2509 = vpop.f32.mrf.mxu0
  %v2510 = vadd.f32 %v2381, %v2509
  %2511 = vmatmul.bf16.gmra.mxu0 %v2034
  %v2512 = vpop.f32.mrf.mxu0
  %v2513 = vadd.f32 %v2384, %v2512
  %v2514 = vpop.f32.mrf.mxu0
  %v2515 = vadd.f32 %v2386, %v2514
  %2516 = vmatmul.bf16.gmra.mxu0 %v2038
  %v2517 = vpop.f32.mrf.mxu0
  %v2518 = vadd.f32 %v2389, %v2517
  %v2519 = vpop.f32.mrf.mxu0
  %v2520 = vadd.f32 %v2391, %v2519
  %2521 = vmatmul.bf16.gmra.mxu0 %v2042
  %v2522 = vpop.f32.mrf.mxu0
  %v2523 = vadd.f32 %v2394, %v2522
  %v2524 = vpop.f32.mrf.mxu0
  %v2525 = vadd.f32 %v2396, %v2524
  %2526 = vdwg.mxu0
  %2527 = vmatpush.bf16.msra.mxu0 %v1370
  %2528 = vmatpush.bf16.msra.mxu0 %v1368
  %2529 = vmatpush.bf16.msra.mxu0 %v1366
  %2530 = vmatpush.bf16.msra.mxu0 %v1364
  %2531 = vmatpush.bf16.msra.mxu0 %v1362
  %2532 = vmatpush.bf16.msra.mxu0 %v1360
  %2533 = vmatpush.bf16.msra.mxu0 %v1358
  %2534 = vmatpush.bf16.msra.mxu0 %v1356
  %2535 = vmatmul.bf16.gmra.mxu0 %v1951
  %v2536 = vpop.f32.mrf.mxu0
  %v2537 = vadd.f32 %v2408, %v2536
  %v2538 = vpop.f32.mrf.mxu0
  %v2539 = vadd.f32 %v2410, %v2538
  %2540 = vmatmul.bf16.gmra.mxu0 %v1955
  %v2541 = vpop.f32.mrf.mxu0
  %v2542 = vadd.f32 %v2413, %v2541
  %v2543 = vpop.f32.mrf.mxu0
  %v2544 = vadd.f32 %v2415, %v2543
  %2545 = vmatmul.bf16.gmra.mxu0 %v1959
  %v2546 = vpop.f32.mrf.mxu0
  %v2547 = vadd.f32 %v2418, %v2546
  %v2548 = vpop.f32.mrf.mxu0
  %v2549 = vadd.f32 %v2420, %v2548
  %2550 = vmatmul.bf16.gmra.mxu0 %v1963
  %v2551 = vpop.f32.mrf.mxu0
  %v2552 = vadd.f32 %v2423, %v2551
  %v2553 = vpop.f32.mrf.mxu0
  %v2554 = vadd.f32 %v2425, %v2553
  %2555 = vmatmul.bf16.gmra.mxu0 %v1967
  %v2556 = vpop.f32.mrf.mxu0
  %v2557 = vadd.f32 %v2428, %v2556
  %v2558 = vpop.f32.mrf.mxu0
  %v2559 = vadd.f32 %v2430, %v2558
  %2560 = vmatmul.bf16.gmra.mxu0 %v1971
  %v2561 = vpop.f32.mrf.mxu0
  %v2562 = vadd.f32 %v2433, %v2561
  %v2563 = vpop.f32.mrf.mxu0
  %v2564 = vadd.f32 %v2435, %v2563
  %2565 = vmatmul.bf16.gmra.mxu0 %v1975
  %v2566 = vpop.f32.mrf.mxu0
  %v2567 = vadd.f32 %v2438, %v2566
  %v2568 = vpop.f32.mrf.mxu0
  %v2569 = vadd.f32 %v2440, %v2568
  %2570 = vmatmul.bf16.gmra.mxu0 %v1979
  %v2571 = vpop.f32.mrf.mxu0
  %v2572 = vadd.f32 %v2443, %v2571
  %v2573 = vpop.f32.mrf.mxu0
  %v2574 = vadd.f32 %v2445, %v2573
  %2575 = vmatmul.bf16.gmra.mxu0 %v1983
  %v2576 = vpop.f32.mrf.mxu0
  %v2577 = vadd.f32 %v2448, %v2576
  %v2578 = vpop.f32.mrf.mxu0
  %v2579 = vadd.f32 %v2450, %v2578
  %2580 = vmatmul.bf16.gmra.mxu0 %v1987
  %v2581 = vpop.f32.mrf.mxu0
  %v2582 = vadd.f32 %v2453, %v2581
  %v2583 = vpop.f32.mrf.mxu0
  %v2584 = vadd.f32 %v2455, %v2583
  %2585 = vmatmul.bf16.gmra.mxu0 %v1991
  %v2586 = vpop.f32.mrf.mxu0
  %v2587 = vadd.f32 %v2458, %v2586
  %v2588 = vpop.f32.mrf.mxu0
  %v2589 = vadd.f32 %v2460, %v2588
  %2590 = vmatmul.bf16.gmra.mxu0 %v1995
  %v2591 = vpop.f32.mrf.mxu0
  %v2592 = vadd.f32 %v2463, %v2591
  %v2593 = vpop.f32.mrf.mxu0
  %v2594 = vadd.f32 %v2465, %v2593
  %2595 = vmatmul.bf16.gmra.mxu0 %v1999
  %v2596 = vpop.f32.mrf.mxu0
  %v2597 = vadd.f32 %v2468, %v2596
  %v2598 = vpop.f32.mrf.mxu0
  %v2599 = vadd.f32 %v2470, %v2598
  %2600 = vmatmul.bf16.gmra.mxu0 %v2003
  %v2601 = vpop.f32.mrf.mxu0
  %v2602 = vadd.f32 %v2473, %v2601
  %v2603 = vpop.f32.mrf.mxu0
  %v2604 = vadd.f32 %v2475, %v2603
  %2605 = vmatmul.bf16.gmra.mxu0 %v2007
  %v2606 = vpop.f32.mrf.mxu0
  %v2607 = vadd.f32 %v2478, %v2606
  %v2608 = vpop.f32.mrf.mxu0
  %v2609 = vadd.f32 %v2480, %v2608
  %2610 = vmatmul.bf16.gmra.mxu0 %v2011
  %v2611 = vpop.f32.mrf.mxu0
  %v2612 = vadd.f32 %v2483, %v2611
  %v2613 = vpop.f32.mrf.mxu0
  %v2614 = vadd.f32 %v2485, %v2613
  %2615 = vmatmul.bf16.gmra.mxu0 %v2015
  %v2616 = vpop.f32.mrf.mxu0
  %v2617 = vadd.f32 %v2488, %v2616
  %v2618 = vpop.f32.mrf.mxu0
  %v2619 = vadd.f32 %v2490, %v2618
  %2620 = vmatmul.bf16.gmra.mxu0 %v2019
  %v2621 = vpop.f32.mrf.mxu0
  %v2622 = vadd.f32 %v2493, %v2621
  %v2623 = vpop.f32.mrf.mxu0
  %v2624 = vadd.f32 %v2495, %v2623
  %2625 = vmatmul.bf16.gmra.mxu0 %v2023
  %v2626 = vpop.f32.mrf.mxu0
  %v2627 = vadd.f32 %v2498, %v2626
  %v2628 = vpop.f32.mrf.mxu0
  %v2629 = vadd.f32 %v2500, %v2628
  %2630 = vmatmul.bf16.gmra.mxu0 %v2027
  %v2631 = vpop.f32.mrf.mxu0
  %v2632 = vadd.f32 %v2503, %v2631
  %v2633 = vpop.f32.mrf.mxu0
  %v2634 = vadd.f32 %v2505, %v2633
  %2635 = vmatmul.bf16.gmra.mxu0 %v2031
  %v2636 = vpop.f32.mrf.mxu0
  %v2637 = vadd.f32 %v2508, %v2636
  %v2638 = vpop.f32.mrf.mxu0
  %v2639 = vadd.f32 %v2510, %v2638
  %2640 = vmatmul.bf16.gmra.mxu0 %v2035
  %v2641 = vpop.f32.mrf.mxu0
  %v2642 = vadd.f32 %v2513, %v2641
  %v2643 = vpop.f32.mrf.mxu0
  %v2644 = vadd.f32 %v2515, %v2643
  %2645 = vmatmul.bf16.gmra.mxu0 %v2039
  %v2646 = vpop.f32.mrf.mxu0
  %v2647 = vadd.f32 %v2518, %v2646
  %v2648 = vpop.f32.mrf.mxu0
  %v2649 = vadd.f32 %v2520, %v2648
  %2650 = vmatmul.bf16.gmra.mxu0 %v2043
  %v2651 = vpop.f32.mrf.mxu0
  %v2652 = vadd.f32 %v2523, %v2651
  %v2653 = vpop.f32.mrf.mxu0
  %v2654 = vadd.f32 %v2525, %v2653
  %2655 = vdwg.mxu0
  %2656 = vmatpush.bf16.msra.mxu0 %v1323
  %2657 = vmatpush.bf16.msra.mxu0 %v1321
  %2658 = vmatpush.bf16.msra.mxu0 %v1319
  %2659 = vmatpush.bf16.msra.mxu0 %v1317
  %2660 = vmatpush.bf16.msra.mxu0 %v1315
  %2661 = vmatpush.bf16.msra.mxu0 %v1313
  %2662 = vmatpush.bf16.msra.mxu0 %v1311
  %2663 = vmatpush.bf16.msra.mxu0 %v1309
  %2664 = vmatmul.bf16.gmra.mxu0 %v1948
  %v2665 = vpop.f32.mrf.mxu0
  %v2666 = vadd.f32 %v1423, %v2665
  %v2667 = vpop.f32.mrf.mxu0
  %v2668 = vadd.f32 %v1428, %v2667
  %2669 = vmatmul.bf16.gmra.mxu0 %v1952
  %v2670 = vpop.f32.mrf.mxu0
  %v2671 = vadd.f32 %v1433, %v2670
  %v2672 = vpop.f32.mrf.mxu0
  %v2673 = vadd.f32 %v1438, %v2672
  %2674 = vmatmul.bf16.gmra.mxu0 %v1956
  %v2675 = vpop.f32.mrf.mxu0
  %v2676 = vadd.f32 %v1443, %v2675
  %v2677 = vpop.f32.mrf.mxu0
  %v2678 = vadd.f32 %v1448, %v2677
  %2679 = vmatmul.bf16.gmra.mxu0 %v1960
  %v2680 = vpop.f32.mrf.mxu0
  %v2681 = vadd.f32 %v1453, %v2680
  %v2682 = vpop.f32.mrf.mxu0
  %v2683 = vadd.f32 %v1458, %v2682
  %2684 = vmatmul.bf16.gmra.mxu0 %v1964
  %v2685 = vpop.f32.mrf.mxu0
  %v2686 = vadd.f32 %v1463, %v2685
  %v2687 = vpop.f32.mrf.mxu0
  %v2688 = vadd.f32 %v1468, %v2687
  %2689 = vmatmul.bf16.gmra.mxu0 %v1968
  %v2690 = vpop.f32.mrf.mxu0
  %v2691 = vadd.f32 %v1473, %v2690
  %v2692 = vpop.f32.mrf.mxu0
  %v2693 = vadd.f32 %v1478, %v2692
  %2694 = vmatmul.bf16.gmra.mxu0 %v1972
  %v2695 = vpop.f32.mrf.mxu0
  %v2696 = vadd.f32 %v1483, %v2695
  %v2697 = vpop.f32.mrf.mxu0
  %v2698 = vadd.f32 %v1488, %v2697
  %2699 = vmatmul.bf16.gmra.mxu0 %v1976
  %v2700 = vpop.f32.mrf.mxu0
  %v2701 = vadd.f32 %v1493, %v2700
  %v2702 = vpop.f32.mrf.mxu0
  %v2703 = vadd.f32 %v1498, %v2702
  %2704 = vmatmul.bf16.gmra.mxu0 %v1980
  %v2705 = vpop.f32.mrf.mxu0
  %v2706 = vadd.f32 %v1503, %v2705
  %v2707 = vpop.f32.mrf.mxu0
  %v2708 = vadd.f32 %v1508, %v2707
  %2709 = vmatmul.bf16.gmra.mxu0 %v1984
  %v2710 = vpop.f32.mrf.mxu0
  %v2711 = vadd.f32 %v1513, %v2710
  %v2712 = vpop.f32.mrf.mxu0
  %v2713 = vadd.f32 %v1518, %v2712
  %2714 = vmatmul.bf16.gmra.mxu0 %v1988
  %v2715 = vpop.f32.mrf.mxu0
  %v2716 = vadd.f32 %v1523, %v2715
  %v2717 = vpop.f32.mrf.mxu0
  %v2718 = vadd.f32 %v1528, %v2717
  %2719 = vmatmul.bf16.gmra.mxu0 %v1992
  %v2720 = vpop.f32.mrf.mxu0
  %v2721 = vadd.f32 %v1533, %v2720
  %v2722 = vpop.f32.mrf.mxu0
  %v2723 = vadd.f32 %v1538, %v2722
  %2724 = vmatmul.bf16.gmra.mxu0 %v1996
  %v2725 = vpop.f32.mrf.mxu0
  %v2726 = vadd.f32 %v1543, %v2725
  %v2727 = vpop.f32.mrf.mxu0
  %v2728 = vadd.f32 %v1548, %v2727
  %2729 = vmatmul.bf16.gmra.mxu0 %v2000
  %v2730 = vpop.f32.mrf.mxu0
  %v2731 = vadd.f32 %v1553, %v2730
  %v2732 = vpop.f32.mrf.mxu0
  %v2733 = vadd.f32 %v1558, %v2732
  %2734 = vmatmul.bf16.gmra.mxu0 %v2004
  %v2735 = vpop.f32.mrf.mxu0
  %v2736 = vadd.f32 %v1563, %v2735
  %v2737 = vpop.f32.mrf.mxu0
  %v2738 = vadd.f32 %v1568, %v2737
  %2739 = vmatmul.bf16.gmra.mxu0 %v2008
  %v2740 = vpop.f32.mrf.mxu0
  %v2741 = vadd.f32 %v1573, %v2740
  %v2742 = vpop.f32.mrf.mxu0
  %v2743 = vadd.f32 %v1578, %v2742
  %2744 = vmatmul.bf16.gmra.mxu0 %v2012
  %v2745 = vpop.f32.mrf.mxu0
  %v2746 = vadd.f32 %v1583, %v2745
  %v2747 = vpop.f32.mrf.mxu0
  %v2748 = vadd.f32 %v1588, %v2747
  %2749 = vmatmul.bf16.gmra.mxu0 %v2016
  %v2750 = vpop.f32.mrf.mxu0
  %v2751 = vadd.f32 %v1593, %v2750
  %v2752 = vpop.f32.mrf.mxu0
  %v2753 = vadd.f32 %v1598, %v2752
  %2754 = vmatmul.bf16.gmra.mxu0 %v2020
  %v2755 = vpop.f32.mrf.mxu0
  %v2756 = vadd.f32 %v1603, %v2755
  %v2757 = vpop.f32.mrf.mxu0
  %v2758 = vadd.f32 %v1608, %v2757
  %2759 = vmatmul.bf16.gmra.mxu0 %v2024
  %v2760 = vpop.f32.mrf.mxu0
  %v2761 = vadd.f32 %v1613, %v2760
  %v2762 = vpop.f32.mrf.mxu0
  %v2763 = vadd.f32 %v1618, %v2762
  %2764 = vmatmul.bf16.gmra.mxu0 %v2028
  %v2765 = vpop.f32.mrf.mxu0
  %v2766 = vadd.f32 %v1623, %v2765
  %v2767 = vpop.f32.mrf.mxu0
  %v2768 = vadd.f32 %v1628, %v2767
  %2769 = vmatmul.bf16.gmra.mxu0 %v2032
  %v2770 = vpop.f32.mrf.mxu0
  %v2771 = vadd.f32 %v1633, %v2770
  %v2772 = vpop.f32.mrf.mxu0
  %v2773 = vadd.f32 %v1638, %v2772
  %2774 = vmatmul.bf16.gmra.mxu0 %v2036
  %v2775 = vpop.f32.mrf.mxu0
  %v2776 = vadd.f32 %v1643, %v2775
  %v2777 = vpop.f32.mrf.mxu0
  %v2778 = vadd.f32 %v1648, %v2777
  %2779 = vmatmul.bf16.gmra.mxu0 %v2040
  %v2780 = vpop.f32.mrf.mxu0
  %v2781 = vadd.f32 %v1653, %v2780
  %v2782 = vpop.f32.mrf.mxu0
  %v2783 = vadd.f32 %v1658, %v2782
  %2784 = vdwg.mxu0
  %2785 = vmatpush.bf16.msra.mxu0 %v1339
  %2786 = vmatpush.bf16.msra.mxu0 %v1337
  %2787 = vmatpush.bf16.msra.mxu0 %v1335
  %2788 = vmatpush.bf16.msra.mxu0 %v1333
  %2789 = vmatpush.bf16.msra.mxu0 %v1331
  %2790 = vmatpush.bf16.msra.mxu0 %v1329
  %2791 = vmatpush.bf16.msra.mxu0 %v1327
  %2792 = vmatpush.bf16.msra.mxu0 %v1325
  %2793 = vmatmul.bf16.gmra.mxu0 %v1949
  %v2794 = vpop.f32.mrf.mxu0
  %v2795 = vadd.f32 %v2666, %v2794
  %v2796 = vpop.f32.mrf.mxu0
  %v2797 = vadd.f32 %v2668, %v2796
  %2798 = vmatmul.bf16.gmra.mxu0 %v1953
  %v2799 = vpop.f32.mrf.mxu0
  %v2800 = vadd.f32 %v2671, %v2799
  %v2801 = vpop.f32.mrf.mxu0
  %v2802 = vadd.f32 %v2673, %v2801
  %2803 = vmatmul.bf16.gmra.mxu0 %v1957
  %v2804 = vpop.f32.mrf.mxu0
  %v2805 = vadd.f32 %v2676, %v2804
  %v2806 = vpop.f32.mrf.mxu0
  %v2807 = vadd.f32 %v2678, %v2806
  %2808 = vmatmul.bf16.gmra.mxu0 %v1961
  %v2809 = vpop.f32.mrf.mxu0
  %v2810 = vadd.f32 %v2681, %v2809
  %v2811 = vpop.f32.mrf.mxu0
  %v2812 = vadd.f32 %v2683, %v2811
  %2813 = vmatmul.bf16.gmra.mxu0 %v1965
  %v2814 = vpop.f32.mrf.mxu0
  %v2815 = vadd.f32 %v2686, %v2814
  %v2816 = vpop.f32.mrf.mxu0
  %v2817 = vadd.f32 %v2688, %v2816
  %2818 = vmatmul.bf16.gmra.mxu0 %v1969
  %v2819 = vpop.f32.mrf.mxu0
  %v2820 = vadd.f32 %v2691, %v2819
  %v2821 = vpop.f32.mrf.mxu0
  %v2822 = vadd.f32 %v2693, %v2821
  %2823 = vmatmul.bf16.gmra.mxu0 %v1973
  %v2824 = vpop.f32.mrf.mxu0
  %v2825 = vadd.f32 %v2696, %v2824
  %v2826 = vpop.f32.mrf.mxu0
  %v2827 = vadd.f32 %v2698, %v2826
  %2828 = vmatmul.bf16.gmra.mxu0 %v1977
  %v2829 = vpop.f32.mrf.mxu0
  %v2830 = vadd.f32 %v2701, %v2829
  %v2831 = vpop.f32.mrf.mxu0
  %v2832 = vadd.f32 %v2703, %v2831
  %2833 = vmatmul.bf16.gmra.mxu0 %v1981
  %v2834 = vpop.f32.mrf.mxu0
  %v2835 = vadd.f32 %v2706, %v2834
  %v2836 = vpop.f32.mrf.mxu0
  %v2837 = vadd.f32 %v2708, %v2836
  %2838 = vmatmul.bf16.gmra.mxu0 %v1985
  %v2839 = vpop.f32.mrf.mxu0
  %v2840 = vadd.f32 %v2711, %v2839
  %v2841 = vpop.f32.mrf.mxu0
  %v2842 = vadd.f32 %v2713, %v2841
  %2843 = vmatmul.bf16.gmra.mxu0 %v1989
  %v2844 = vpop.f32.mrf.mxu0
  %v2845 = vadd.f32 %v2716, %v2844
  %v2846 = vpop.f32.mrf.mxu0
  %v2847 = vadd.f32 %v2718, %v2846
  %2848 = vmatmul.bf16.gmra.mxu0 %v1993
  %v2849 = vpop.f32.mrf.mxu0
  %v2850 = vadd.f32 %v2721, %v2849
  %v2851 = vpop.f32.mrf.mxu0
  %v2852 = vadd.f32 %v2723, %v2851
  %2853 = vmatmul.bf16.gmra.mxu0 %v1997
  %v2854 = vpop.f32.mrf.mxu0
  %v2855 = vadd.f32 %v2726, %v2854
  %v2856 = vpop.f32.mrf.mxu0
  %v2857 = vadd.f32 %v2728, %v2856
  %2858 = vmatmul.bf16.gmra.mxu0 %v2001
  %v2859 = vpop.f32.mrf.mxu0
  %v2860 = vadd.f32 %v2731, %v2859
  %v2861 = vpop.f32.mrf.mxu0
  %v2862 = vadd.f32 %v2733, %v2861
  %2863 = vmatmul.bf16.gmra.mxu0 %v2005
  %v2864 = vpop.f32.mrf.mxu0
  %v2865 = vadd.f32 %v2736, %v2864
  %v2866 = vpop.f32.mrf.mxu0
  %v2867 = vadd.f32 %v2738, %v2866
  %2868 = vmatmul.bf16.gmra.mxu0 %v2009
  %v2869 = vpop.f32.mrf.mxu0
  %v2870 = vadd.f32 %v2741, %v2869
  %v2871 = vpop.f32.mrf.mxu0
  %v2872 = vadd.f32 %v2743, %v2871
  %2873 = vmatmul.bf16.gmra.mxu0 %v2013
  %v2874 = vpop.f32.mrf.mxu0
  %v2875 = vadd.f32 %v2746, %v2874
  %v2876 = vpop.f32.mrf.mxu0
  %v2877 = vadd.f32 %v2748, %v2876
  %2878 = vmatmul.bf16.gmra.mxu0 %v2017
  %v2879 = vpop.f32.mrf.mxu0
  %v2880 = vadd.f32 %v2751, %v2879
  %v2881 = vpop.f32.mrf.mxu0
  %v2882 = vadd.f32 %v2753, %v2881
  %2883 = vmatmul.bf16.gmra.mxu0 %v2021
  %v2884 = vpop.f32.mrf.mxu0
  %v2885 = vadd.f32 %v2756, %v2884
  %v2886 = vpop.f32.mrf.mxu0
  %v2887 = vadd.f32 %v2758, %v2886
  %2888 = vmatmul.bf16.gmra.mxu0 %v2025
  %v2889 = vpop.f32.mrf.mxu0
  %v2890 = vadd.f32 %v2761, %v2889
  %v2891 = vpop.f32.mrf.mxu0
  %v2892 = vadd.f32 %v2763, %v2891
  %2893 = vmatmul.bf16.gmra.mxu0 %v2029
  %v2894 = vpop.f32.mrf.mxu0
  %v2895 = vadd.f32 %v2766, %v2894
  %v2896 = vpop.f32.mrf.mxu0
  %v2897 = vadd.f32 %v2768, %v2896
  %2898 = vmatmul.bf16.gmra.mxu0 %v2033
  %v2899 = vpop.f32.mrf.mxu0
  %v2900 = vadd.f32 %v2771, %v2899
  %v2901 = vpop.f32.mrf.mxu0
  %v2902 = vadd.f32 %v2773, %v2901
  %2903 = vmatmul.bf16.gmra.mxu0 %v2037
  %v2904 = vpop.f32.mrf.mxu0
  %v2905 = vadd.f32 %v2776, %v2904
  %v2906 = vpop.f32.mrf.mxu0
  %v2907 = vadd.f32 %v2778, %v2906
  %2908 = vmatmul.bf16.gmra.mxu0 %v2041
  %v2909 = vpop.f32.mrf.mxu0
  %v2910 = vadd.f32 %v2781, %v2909
  %v2911 = vpop.f32.mrf.mxu0
  %v2912 = vadd.f32 %v2783, %v2911
  %2913 = vdwg.mxu0
  %2914 = vmatpush.bf16.msra.mxu0 %v1355
  %2915 = vmatpush.bf16.msra.mxu0 %v1353
  %2916 = vmatpush.bf16.msra.mxu0 %v1351
  %2917 = vmatpush.bf16.msra.mxu0 %v1349
  %2918 = vmatpush.bf16.msra.mxu0 %v1347
  %2919 = vmatpush.bf16.msra.mxu0 %v1345
  %2920 = vmatpush.bf16.msra.mxu0 %v1343
  %2921 = vmatpush.bf16.msra.mxu0 %v1341
  %2922 = vmatmul.bf16.gmra.mxu0 %v1950
  %v2923 = vpop.f32.mrf.mxu0
  %v2924 = vadd.f32 %v2795, %v2923
  %v2925 = vpop.f32.mrf.mxu0
  %v2926 = vadd.f32 %v2797, %v2925
  %2927 = vmatmul.bf16.gmra.mxu0 %v1954
  %v2928 = vpop.f32.mrf.mxu0
  %v2929 = vadd.f32 %v2800, %v2928
  %v2930 = vpop.f32.mrf.mxu0
  %v2931 = vadd.f32 %v2802, %v2930
  %2932 = vmatmul.bf16.gmra.mxu0 %v1958
  %v2933 = vpop.f32.mrf.mxu0
  %v2934 = vadd.f32 %v2805, %v2933
  %v2935 = vpop.f32.mrf.mxu0
  %v2936 = vadd.f32 %v2807, %v2935
  %2937 = vmatmul.bf16.gmra.mxu0 %v1962
  %v2938 = vpop.f32.mrf.mxu0
  %v2939 = vadd.f32 %v2810, %v2938
  %v2940 = vpop.f32.mrf.mxu0
  %v2941 = vadd.f32 %v2812, %v2940
  %2942 = vmatmul.bf16.gmra.mxu0 %v1966
  %v2943 = vpop.f32.mrf.mxu0
  %v2944 = vadd.f32 %v2815, %v2943
  %v2945 = vpop.f32.mrf.mxu0
  %v2946 = vadd.f32 %v2817, %v2945
  %2947 = vmatmul.bf16.gmra.mxu0 %v1970
  %v2948 = vpop.f32.mrf.mxu0
  %v2949 = vadd.f32 %v2820, %v2948
  %v2950 = vpop.f32.mrf.mxu0
  %v2951 = vadd.f32 %v2822, %v2950
  %2952 = vmatmul.bf16.gmra.mxu0 %v1974
  %v2953 = vpop.f32.mrf.mxu0
  %v2954 = vadd.f32 %v2825, %v2953
  %v2955 = vpop.f32.mrf.mxu0
  %v2956 = vadd.f32 %v2827, %v2955
  %2957 = vmatmul.bf16.gmra.mxu0 %v1978
  %v2958 = vpop.f32.mrf.mxu0
  %v2959 = vadd.f32 %v2830, %v2958
  %v2960 = vpop.f32.mrf.mxu0
  %v2961 = vadd.f32 %v2832, %v2960
  %2962 = vmatmul.bf16.gmra.mxu0 %v1982
  %v2963 = vpop.f32.mrf.mxu0
  %v2964 = vadd.f32 %v2835, %v2963
  %v2965 = vpop.f32.mrf.mxu0
  %v2966 = vadd.f32 %v2837, %v2965
  %2967 = vmatmul.bf16.gmra.mxu0 %v1986
  %v2968 = vpop.f32.mrf.mxu0
  %v2969 = vadd.f32 %v2840, %v2968
  %v2970 = vpop.f32.mrf.mxu0
  %v2971 = vadd.f32 %v2842, %v2970
  %2972 = vmatmul.bf16.gmra.mxu0 %v1990
  %v2973 = vpop.f32.mrf.mxu0
  %v2974 = vadd.f32 %v2845, %v2973
  %v2975 = vpop.f32.mrf.mxu0
  %v2976 = vadd.f32 %v2847, %v2975
  %2977 = vmatmul.bf16.gmra.mxu0 %v1994
  %v2978 = vpop.f32.mrf.mxu0
  %v2979 = vadd.f32 %v2850, %v2978
  %v2980 = vpop.f32.mrf.mxu0
  %v2981 = vadd.f32 %v2852, %v2980
  %2982 = vmatmul.bf16.gmra.mxu0 %v1998
  %v2983 = vpop.f32.mrf.mxu0
  %v2984 = vadd.f32 %v2855, %v2983
  %v2985 = vpop.f32.mrf.mxu0
  %v2986 = vadd.f32 %v2857, %v2985
  %2987 = vmatmul.bf16.gmra.mxu0 %v2002
  %v2988 = vpop.f32.mrf.mxu0
  %v2989 = vadd.f32 %v2860, %v2988
  %v2990 = vpop.f32.mrf.mxu0
  %v2991 = vadd.f32 %v2862, %v2990
  %2992 = vmatmul.bf16.gmra.mxu0 %v2006
  %v2993 = vpop.f32.mrf.mxu0
  %v2994 = vadd.f32 %v2865, %v2993
  %v2995 = vpop.f32.mrf.mxu0
  %v2996 = vadd.f32 %v2867, %v2995
  %2997 = vmatmul.bf16.gmra.mxu0 %v2010
  %v2998 = vpop.f32.mrf.mxu0
  %v2999 = vadd.f32 %v2870, %v2998
  %v3000 = vpop.f32.mrf.mxu0
  %v3001 = vadd.f32 %v2872, %v3000
  %3002 = vmatmul.bf16.gmra.mxu0 %v2014
  %v3003 = vpop.f32.mrf.mxu0
  %v3004 = vadd.f32 %v2875, %v3003
  %v3005 = vpop.f32.mrf.mxu0
  %v3006 = vadd.f32 %v2877, %v3005
  %3007 = vmatmul.bf16.gmra.mxu0 %v2018
  %v3008 = vpop.f32.mrf.mxu0
  %v3009 = vadd.f32 %v2880, %v3008
  %v3010 = vpop.f32.mrf.mxu0
  %v3011 = vadd.f32 %v2882, %v3010
  %3012 = vmatmul.bf16.gmra.mxu0 %v2022
  %v3013 = vpop.f32.mrf.mxu0
  %v3014 = vadd.f32 %v2885, %v3013
  %v3015 = vpop.f32.mrf.mxu0
  %v3016 = vadd.f32 %v2887, %v3015
  %3017 = vmatmul.bf16.gmra.mxu0 %v2026
  %v3018 = vpop.f32.mrf.mxu0
  %v3019 = vadd.f32 %v2890, %v3018
  %v3020 = vpop.f32.mrf.mxu0
  %v3021 = vadd.f32 %v2892, %v3020
  %3022 = vmatmul.bf16.gmra.mxu0 %v2030
  %v3023 = vpop.f32.mrf.mxu0
  %v3024 = vadd.f32 %v2895, %v3023
  %v3025 = vpop.f32.mrf.mxu0
  %v3026 = vadd.f32 %v2897, %v3025
  %3027 = vmatmul.bf16.gmra.mxu0 %v2034
  %v3028 = vpop.f32.mrf.mxu0
  %v3029 = vadd.f32 %v2900, %v3028
  %v3030 = vpop.f32.mrf.mxu0
  %v3031 = vadd.f32 %v2902, %v3030
  %3032 = vmatmul.bf16.gmra.mxu0 %v2038
  %v3033 = vpop.f32.mrf.mxu0
  %v3034 = vadd.f32 %v2905, %v3033
  %v3035 = vpop.f32.mrf.mxu0
  %v3036 = vadd.f32 %v2907, %v3035
  %3037 = vmatmul.bf16.gmra.mxu0 %v2042
  %v3038 = vpop.f32.mrf.mxu0
  %v3039 = vadd.f32 %v2910, %v3038
  %v3040 = vpop.f32.mrf.mxu0
  %v3041 = vadd.f32 %v2912, %v3040
  %3042 = vdwg.mxu0
  %3043 = vmatpush.bf16.msra.mxu0 %v1371
  %3044 = vmatpush.bf16.msra.mxu0 %v1369
  %3045 = vmatpush.bf16.msra.mxu0 %v1367
  %3046 = vmatpush.bf16.msra.mxu0 %v1365
  %3047 = vmatpush.bf16.msra.mxu0 %v1363
  %3048 = vmatpush.bf16.msra.mxu0 %v1361
  %3049 = vmatpush.bf16.msra.mxu0 %v1359
  %3050 = vmatpush.bf16.msra.mxu0 %v1357
  %3051 = vmatmul.bf16.gmra.mxu0 %v1951
  %v3052 = vpop.f32.mrf.mxu0
  %v3053 = vadd.f32 %v2924, %v3052
  %v3054 = vpop.f32.mrf.mxu0
  %v3055 = vadd.f32 %v2926, %v3054
  %3056 = vmatmul.bf16.gmra.mxu0 %v1955
  %v3057 = vpop.f32.mrf.mxu0
  %v3058 = vadd.f32 %v2929, %v3057
  %v3059 = vpop.f32.mrf.mxu0
  %v3060 = vadd.f32 %v2931, %v3059
  %3061 = vmatmul.bf16.gmra.mxu0 %v1959
  %v3062 = vpop.f32.mrf.mxu0
  %v3063 = vadd.f32 %v2934, %v3062
  %v3064 = vpop.f32.mrf.mxu0
  %v3065 = vadd.f32 %v2936, %v3064
  %3066 = vmatmul.bf16.gmra.mxu0 %v1963
  %v3067 = vpop.f32.mrf.mxu0
  %v3068 = vadd.f32 %v2939, %v3067
  %v3069 = vpop.f32.mrf.mxu0
  %v3070 = vadd.f32 %v2941, %v3069
  %3071 = vmatmul.bf16.gmra.mxu0 %v1967
  %v3072 = vpop.f32.mrf.mxu0
  %v3073 = vadd.f32 %v2944, %v3072
  %v3074 = vpop.f32.mrf.mxu0
  %v3075 = vadd.f32 %v2946, %v3074
  %3076 = vmatmul.bf16.gmra.mxu0 %v1971
  %v3077 = vpop.f32.mrf.mxu0
  %v3078 = vadd.f32 %v2949, %v3077
  %v3079 = vpop.f32.mrf.mxu0
  %v3080 = vadd.f32 %v2951, %v3079
  %3081 = vmatmul.bf16.gmra.mxu0 %v1975
  %v3082 = vpop.f32.mrf.mxu0
  %v3083 = vadd.f32 %v2954, %v3082
  %v3084 = vpop.f32.mrf.mxu0
  %v3085 = vadd.f32 %v2956, %v3084
  %3086 = vmatmul.bf16.gmra.mxu0 %v1979
  %v3087 = vpop.f32.mrf.mxu0
  %v3088 = vadd.f32 %v2959, %v3087
  %v3089 = vpop.f32.mrf.mxu0
  %v3090 = vadd.f32 %v2961, %v3089
  %3091 = vmatmul.bf16.gmra.mxu0 %v1983
  %v3092 = vpop.f32.mrf.mxu0
  %v3093 = vadd.f32 %v2964, %v3092
  %v3094 = vpop.f32.mrf.mxu0
  %v3095 = vadd.f32 %v2966, %v3094
  %3096 = vmatmul.bf16.gmra.mxu0 %v1987
  %v3097 = vpop.f32.mrf.mxu0
  %v3098 = vadd.f32 %v2969, %v3097
  %v3099 = vpop.f32.mrf.mxu0
  %v3100 = vadd.f32 %v2971, %v3099
  %3101 = vmatmul.bf16.gmra.mxu0 %v1991
  %v3102 = vpop.f32.mrf.mxu0
  %v3103 = vadd.f32 %v2974, %v3102
  %v3104 = vpop.f32.mrf.mxu0
  %v3105 = vadd.f32 %v2976, %v3104
  %3106 = vmatmul.bf16.gmra.mxu0 %v1995
  %v3107 = vpop.f32.mrf.mxu0
  %v3108 = vadd.f32 %v2979, %v3107
  %v3109 = vpop.f32.mrf.mxu0
  %v3110 = vadd.f32 %v2981, %v3109
  %3111 = vmatmul.bf16.gmra.mxu0 %v1999
  %v3112 = vpop.f32.mrf.mxu0
  %v3113 = vadd.f32 %v2984, %v3112
  %v3114 = vpop.f32.mrf.mxu0
  %v3115 = vadd.f32 %v2986, %v3114
  %3116 = vmatmul.bf16.gmra.mxu0 %v2003
  %v3117 = vpop.f32.mrf.mxu0
  %v3118 = vadd.f32 %v2989, %v3117
  %v3119 = vpop.f32.mrf.mxu0
  %v3120 = vadd.f32 %v2991, %v3119
  %3121 = vmatmul.bf16.gmra.mxu0 %v2007
  %v3122 = vpop.f32.mrf.mxu0
  %v3123 = vadd.f32 %v2994, %v3122
  %v3124 = vpop.f32.mrf.mxu0
  %v3125 = vadd.f32 %v2996, %v3124
  %3126 = vmatmul.bf16.gmra.mxu0 %v2011
  %v3127 = vpop.f32.mrf.mxu0
  %v3128 = vadd.f32 %v2999, %v3127
  %v3129 = vpop.f32.mrf.mxu0
  %v3130 = vadd.f32 %v3001, %v3129
  %3131 = vmatmul.bf16.gmra.mxu0 %v2015
  %v3132 = vpop.f32.mrf.mxu0
  %v3133 = vadd.f32 %v3004, %v3132
  %v3134 = vpop.f32.mrf.mxu0
  %v3135 = vadd.f32 %v3006, %v3134
  %3136 = vmatmul.bf16.gmra.mxu0 %v2019
  %v3137 = vpop.f32.mrf.mxu0
  %v3138 = vadd.f32 %v3009, %v3137
  %v3139 = vpop.f32.mrf.mxu0
  %v3140 = vadd.f32 %v3011, %v3139
  %3141 = vmatmul.bf16.gmra.mxu0 %v2023
  %v3142 = vpop.f32.mrf.mxu0
  %v3143 = vadd.f32 %v3014, %v3142
  %v3144 = vpop.f32.mrf.mxu0
  %v3145 = vadd.f32 %v3016, %v3144
  %3146 = vmatmul.bf16.gmra.mxu0 %v2027
  %v3147 = vpop.f32.mrf.mxu0
  %v3148 = vadd.f32 %v3019, %v3147
  %v3149 = vpop.f32.mrf.mxu0
  %v3150 = vadd.f32 %v3021, %v3149
  %3151 = vmatmul.bf16.gmra.mxu0 %v2031
  %v3152 = vpop.f32.mrf.mxu0
  %v3153 = vadd.f32 %v3024, %v3152
  %v3154 = vpop.f32.mrf.mxu0
  %v3155 = vadd.f32 %v3026, %v3154
  %3156 = vmatmul.bf16.gmra.mxu0 %v2035
  %v3157 = vpop.f32.mrf.mxu0
  %v3158 = vadd.f32 %v3029, %v3157
  %v3159 = vpop.f32.mrf.mxu0
  %v3160 = vadd.f32 %v3031, %v3159
  %3161 = vmatmul.bf16.gmra.mxu0 %v2039
  %v3162 = vpop.f32.mrf.mxu0
  %v3163 = vadd.f32 %v3034, %v3162
  %v3164 = vpop.f32.mrf.mxu0
  %v3165 = vadd.f32 %v3036, %v3164
  %3166 = vmatmul.bf16.gmra.mxu0 %v2043
  %v3167 = vpop.f32.mrf.mxu0
  %v3168 = vadd.f32 %v3039, %v3167
  %v3169 = vpop.f32.mrf.mxu0
  %v3170 = vadd.f32 %v3041, %v3169
  %3171 = vdwg.mxu0
  %v3172 = vmax.f32 %v2537, 0.0
  %v3173 = vmax.f32 %v3053, 0.0
  %v3174 = vmax.f32 %v2539, 0.0
  %v3175 = vmax.f32 %v3055, 0.0
  %v3176 = vmax.f32 %v2542, 0.0
  %v3177 = vmax.f32 %v3058, 0.0
  %v3178 = vmax.f32 %v2544, 0.0
  %v3179 = vmax.f32 %v3060, 0.0
  %v3180 = vmax.f32 %v2547, 0.0
  %v3181 = vmax.f32 %v3063, 0.0
  %v3182 = vmax.f32 %v2549, 0.0
  %v3183 = vmax.f32 %v3065, 0.0
  %v3184 = vmax.f32 %v2552, 0.0
  %v3185 = vmax.f32 %v3068, 0.0
  %v3186 = vmax.f32 %v2554, 0.0
  %v3187 = vmax.f32 %v3070, 0.0
  %v3188 = vmax.f32 %v2557, 0.0
  %v3189 = vmax.f32 %v3073, 0.0
  %v3190 = vmax.f32 %v2559, 0.0
  %v3191 = vmax.f32 %v3075, 0.0
  %v3192 = vmax.f32 %v2562, 0.0
  %v3193 = vmax.f32 %v3078, 0.0
  %v3194 = vmax.f32 %v2564, 0.0
  %v3195 = vmax.f32 %v3080, 0.0
  %v3196 = vmax.f32 %v2567, 0.0
  %v3197 = vmax.f32 %v3083, 0.0
  %v3198 = vmax.f32 %v2569, 0.0
  %v3199 = vmax.f32 %v3085, 0.0
  %v3200 = vmax.f32 %v2572, 0.0
  %v3201 = vmax.f32 %v3088, 0.0
  %v3202 = vmax.f32 %v2574, 0.0
  %v3203 = vmax.f32 %v3090, 0.0
  %v3204 = vmax.f32 %v2577, 0.0
  %v3205 = vmax.f32 %v3093, 0.0
  %v3206 = vmax.f32 %v2579, 0.0
  %v3207 = vmax.f32 %v3095, 0.0
  %v3208 = vmax.f32 %v2582, 0.0
  %v3209 = vmax.f32 %v3098, 0.0
  %v3210 = vmax.f32 %v2584, 0.0
  %v3211 = vmax.f32 %v3100, 0.0
  %v3212 = vmax.f32 %v2587, 0.0
  %v3213 = vmax.f32 %v3103, 0.0
  %v3214 = vmax.f32 %v2589, 0.0
  %v3215 = vmax.f32 %v3105, 0.0
  %v3216 = vmax.f32 %v2592, 0.0
  %v3217 = vmax.f32 %v3108, 0.0
  %v3218 = vmax.f32 %v2594, 0.0
  %v3219 = vmax.f32 %v3110, 0.0
  %v3220 = vmax.f32 %v2597, 0.0
  %v3221 = vmax.f32 %v3113, 0.0
  %v3222 = vmax.f32 %v2599, 0.0
  %v3223 = vmax.f32 %v3115, 0.0
  %v3224 = vmax.f32 %v2602, 0.0
  %v3225 = vmax.f32 %v3118, 0.0
  %v3226 = vmax.f32 %v2604, 0.0
  %v3227 = vmax.f32 %v3120, 0.0
  %v3228 = vmax.f32 %v2607, 0.0
  %v3229 = vmax.f32 %v3123, 0.0
  %v3230 = vmax.f32 %v2609, 0.0
  %v3231 = vmax.f32 %v3125, 0.0
  %v3232 = vmax.f32 %v2612, 0.0
  %v3233 = vmax.f32 %v3128, 0.0
  %v3234 = vmax.f32 %v2614, 0.0
  %v3235 = vmax.f32 %v3130, 0.0
  %v3236 = vmax.f32 %v2617, 0.0
  %v3237 = vmax.f32 %v3133, 0.0
  %v3238 = vmax.f32 %v2619, 0.0
  %v3239 = vmax.f32 %v3135, 0.0
  %v3240 = vmax.f32 %v2622, 0.0
  %v3241 = vmax.f32 %v3138, 0.0
  %v3242 = vmax.f32 %v2624, 0.0
  %v3243 = vmax.f32 %v3140, 0.0
  %v3244 = vmax.f32 %v2627, 0.0
  %v3245 = vmax.f32 %v3143, 0.0
  %v3246 = vmax.f32 %v2629, 0.0
  %v3247 = vmax.f32 %v3145, 0.0
  %v3248 = vmax.f32 %v2632, 0.0
  %v3249 = vmax.f32 %v3148, 0.0
  %v3250 = vmax.f32 %v2634, 0.0
  %v3251 = vmax.f32 %v3150, 0.0
  %v3252 = vmax.f32 %v2637, 0.0
  %v3253 = vmax.f32 %v3153, 0.0
  %v3254 = vmax.f32 %v2639, 0.0
  %v3255 = vmax.f32 %v3155, 0.0
  %v3256 = vmax.f32 %v2642, 0.0
  %v3257 = vmax.f32 %v3158, 0.0
  %v3258 = vmax.f32 %v2644, 0.0
  %v3259 = vmax.f32 %v3160, 0.0
  %v3260 = vmax.f32 %v2647, 0.0
  %v3261 = vmax.f32 %v3163, 0.0
  %v3262 = vmax.f32 %v2649, 0.0
  %v3263 = vmax.f32 %v3165, 0.0
  %v3264 = vmax.f32 %v2652, 0.0
  %v3265 = vmax.f32 %v3168, 0.0
  %v3266 = vmax.f32 %v2654, 0.0
  %v3267 = vmax.f32 %v3170, 0.0
  %v3268 = vld [vmem:[%s5] sm:$0xff]
  %v3269 = vld [vmem:[%s5 + $0x8] sm:$0xff]
  %v3270 = vld [vmem:[%s5 + $0x10] sm:$0xff]
  %3271 = vmatpush.msra.mxu0 %v3202
  %3272 = vmatpush.msra.mxu0 %v3200
  %3273 = vmatpush.msra.mxu0 %v3198
  %3274 = vmatpush.msra.mxu0 %v3196
  %3275 = vmatpush.msra.mxu0 %v3194
  %3276 = vmatpush.msra.mxu0 %v3192
  %3277 = vmatpush.msra.mxu0 %v3190
  %3278 = vmatpush.msra.mxu0 %v3188
  %3279 = vmatpush.msra.mxu0 %v3186
  %3280 = vmatpush.msra.mxu0 %v3184
  %3281 = vmatpush.msra.mxu0 %v3182
  %3282 = vmatpush.msra.mxu0 %v3180
  %3283 = vmatpush.msra.mxu0 %v3178
  %3284 = vmatpush.msra.mxu0 %v3176
  %3285 = vmatpush.msra.mxu0 %v3174
  %3286 = vmatpush.msra.mxu0 %v3172
  %3287 = vmatmul.f32.gmra.mxu0 %v3268
  %v3288 = vpop.f32.mrf.mxu0
  %v3289 = vadd.f32 0.0, %v3288
  %3290 = vdwg.mxu0
  %3291 = vmatpush.msra.mxu0 %v3234
  %3292 = vmatpush.msra.mxu0 %v3232
  %3293 = vmatpush.msra.mxu0 %v3230
  %3294 = vmatpush.msra.mxu0 %v3228
  %3295 = vmatpush.msra.mxu0 %v3226
  %3296 = vmatpush.msra.mxu0 %v3224
  %3297 = vmatpush.msra.mxu0 %v3222
  %3298 = vmatpush.msra.mxu0 %v3220
  %3299 = vmatpush.msra.mxu0 %v3218
  %3300 = vmatpush.msra.mxu0 %v3216
  %3301 = vmatpush.msra.mxu0 %v3214
  %3302 = vmatpush.msra.mxu0 %v3212
  %3303 = vmatpush.msra.mxu0 %v3210
  %3304 = vmatpush.msra.mxu0 %v3208
  %3305 = vmatpush.msra.mxu0 %v3206
  %3306 = vmatpush.msra.mxu0 %v3204
  %3307 = vmatmul.f32.gmra.mxu0 %v3269
  %v3308 = vpop.f32.mrf.mxu0
  %v3309 = vadd.f32 %v3289, %v3308
  %3310 = vdwg.mxu0
  %3311 = vmatpush.msra.mxu0 %v3266
  %3312 = vmatpush.msra.mxu0 %v3264
  %3313 = vmatpush.msra.mxu0 %v3262
  %3314 = vmatpush.msra.mxu0 %v3260
  %3315 = vmatpush.msra.mxu0 %v3258
  %3316 = vmatpush.msra.mxu0 %v3256
  %3317 = vmatpush.msra.mxu0 %v3254
  %3318 = vmatpush.msra.mxu0 %v3252
  %3319 = vmatpush.msra.mxu0 %v3250
  %3320 = vmatpush.msra.mxu0 %v3248
  %3321 = vmatpush.msra.mxu0 %v3246
  %3322 = vmatpush.msra.mxu0 %v3244
  %3323 = vmatpush.msra.mxu0 %v3242
  %3324 = vmatpush.msra.mxu0 %v3240
  %3325 = vmatpush.msra.mxu0 %v3238
  %3326 = vmatpush.msra.mxu0 %v3236
  %3327 = vmatmul.f32.gmra.mxu0 %v3270
  %v3328 = vpop.f32.mrf.mxu0
  %v3329 = vadd.f32 %v3309, %v3328
  %3330 = vdwg.mxu0
  %3331 = vmatpush.msra.mxu0 %v3203
  %3332 = vmatpush.msra.mxu0 %v3201
  %3333 = vmatpush.msra.mxu0 %v3199
  %3334 = vmatpush.msra.mxu0 %v3197
  %3335 = vmatpush.msra.mxu0 %v3195
  %3336 = vmatpush.msra.mxu0 %v3193
  %3337 = vmatpush.msra.mxu0 %v3191
  %3338 = vmatpush.msra.mxu0 %v3189
  %3339 = vmatpush.msra.mxu0 %v3187
  %3340 = vmatpush.msra.mxu0 %v3185
  %3341 = vmatpush.msra.mxu0 %v3183
  %3342 = vmatpush.msra.mxu0 %v3181
  %3343 = vmatpush.msra.mxu0 %v3179
  %3344 = vmatpush.msra.mxu0 %v3177
  %3345 = vmatpush.msra.mxu0 %v3175
  %3346 = vmatpush.msra.mxu0 %v3173
  %3347 = vmatmul.f32.gmra.mxu0 %v3268
  %v3348 = vpop.f32.mrf.mxu0
  %v3349 = vadd.f32 0.0, %v3348
  %3350 = vdwg.mxu0
  %3351 = vmatpush.msra.mxu0 %v3235
  %3352 = vmatpush.msra.mxu0 %v3233
  %3353 = vmatpush.msra.mxu0 %v3231
  %3354 = vmatpush.msra.mxu0 %v3229
  %3355 = vmatpush.msra.mxu0 %v3227
  %3356 = vmatpush.msra.mxu0 %v3225
  %3357 = vmatpush.msra.mxu0 %v3223
  %3358 = vmatpush.msra.mxu0 %v3221
  %3359 = vmatpush.msra.mxu0 %v3219
  %3360 = vmatpush.msra.mxu0 %v3217
  %3361 = vmatpush.msra.mxu0 %v3215
  %3362 = vmatpush.msra.mxu0 %v3213
  %3363 = vmatpush.msra.mxu0 %v3211
  %3364 = vmatpush.msra.mxu0 %v3209
  %3365 = vmatpush.msra.mxu0 %v3207
  %3366 = vmatpush.msra.mxu0 %v3205
  %3367 = vmatmul.f32.gmra.mxu0 %v3269
  %v3368 = vpop.f32.mrf.mxu0
  %v3369 = vadd.f32 %v3349, %v3368
  %3370 = vdwg.mxu0
  %3371 = vmatpush.msra.mxu0 %v3267
  %3372 = vmatpush.msra.mxu0 %v3265
  %3373 = vmatpush.msra.mxu0 %v3263
  %3374 = vmatpush.msra.mxu0 %v3261
  %3375 = vmatpush.msra.mxu0 %v3259
  %3376 = vmatpush.msra.mxu0 %v3257
  %3377 = vmatpush.msra.mxu0 %v3255
  %3378 = vmatpush.msra.mxu0 %v3253
  %3379 = vmatpush.msra.mxu0 %v3251
  %3380 = vmatpush.msra.mxu0 %v3249
  %3381 = vmatpush.msra.mxu0 %v3247
  %3382 = vmatpush.msra.mxu0 %v3245
  %3383 = vmatpush.msra.mxu0 %v3243
  %3384 = vmatpush.msra.mxu0 %v3241
  %3385 = vmatpush.msra.mxu0 %v3239
  %3386 = vmatpush.msra.mxu0 %v3237
  %3387 = vmatmul.f32.gmra.mxu0 %v3270
  %v3388 = vpop.f32.mrf.mxu0
  %v3389 = vadd.f32 %v3369, %v3388
  %3390 = vdwg.mxu0
  %v3391 = vld [vmem:[#allocation2] sm:$0x1]
  %3393 = vset.pattern.permute.xlu0 0
  %3394 = vperm.xlu0 %3393, %v3391
  %v3395 = vpop.permute.xlu0 %3394
  %v3397 = vperm.slane %v3395, 0
  %v3398 = vadd.f32 %v3329, %v3397
  %v3399 = vadd.f32 %v3389, %v3397
  %v3402 = vrot.slane %v3399, 7
  %vm3403 = vcmask 1040384
  %v3404 = vsel %vm3403, %v3398, %v3402
  %v3406 = vlaneseq
  %vm3407 = vcmp.ge.s32.totalorder %v3406, 0
  %vm3408 = vcmp.lt.s32.totalorder %v3406, 256
  %vm3409 = vmand %vm3407, %vm3408
  %3410 = vst.msk [vmem:[%s7] sm:$0x3] %vm3409, %v3404
  // Predicated region
  $region30: #{critic_forward.1} parent=0 // pred_check
    _
  $region31: #{critic_forward.1} parent=0 // pred_check_branch
    %3412 = sbr.rel (0) target = $region33
  $region32: #{critic_forward.1} parent=0 // pred_region
    _
  $region33: #{critic_forward.1} parent=0 // pred_fallthru
    _
  // Predicated region
  $region34: #{critic_forward.1} parent=0 // pred_check
    _
  $region35: #{critic_forward.1} parent=0 // pred_check_branch
    %3414 = sbr.rel (0) target = $region37
  $region36: #{critic_forward.1} parent=0 // pred_region
    _
  $region37: #{critic_forward.1} parent=0 // pred_fallthru
    _

</llo_original>
